<compile_context>
chip_gen: v7x
topology: tpu7x:2x2x1
jax: 0.10.0
libtpu: 0.0.40
codegen_flags: <defaults>
</compile_context>

<pallas_src>
import functools
import math

import jax
import jax.numpy as jnp
from jax.experimental import pallas as pl
from jax.experimental.pallas import tpu as pltpu

EPS = 1e-5                         # nn.LayerNorm default eps
MXU_DTYPE = jnp.bfloat16           # MXU input dtype (f32 accumulate); OK on v5e/v6e/v7x
VMEM_LIMIT_BYTES = 32 * 1024 * 1024


def _cparams(n_grid_axes):
    return pltpu.CompilerParams(
        dimension_semantics=("parallel",) * n_grid_axes,
        vmem_limit_bytes=VMEM_LIMIT_BYTES)


def _block_m(m, target=512):
    # full dim if small (always legal); otherwise an 8-aligned row tile, remainder masked.
    return m if m <= target else target


def _layernorm(y, gamma, beta):
    mean = jnp.mean(y, axis=-1, keepdims=True)
    var = jnp.mean((y - mean) ** 2, axis=-1, keepdims=True)
    return (y - mean) * jax.lax.rsqrt(var + EPS) * gamma + beta


# ----------------------------- generic linear kernels ------------------------

def _linear_kernel(x_ref, w_ref, b_ref, o_ref, *, activation):
    y = jnp.dot(x_ref[...].astype(MXU_DTYPE), w_ref[...].astype(MXU_DTYPE),
                preferred_element_type=jnp.float32) + b_ref[...]
    if activation == "relu":
        y = jnp.maximum(y, 0.0)
    o_ref[...] = y.astype(o_ref.dtype)


def pallas_linear(x, w, b, activation=None):
    M, K = x.shape
    Nout = w.shape[1]
    bm = _block_m(M)
    return pl.pallas_call(
        functools.partial(_linear_kernel, activation=activation),
        out_shape=jax.ShapeDtypeStruct((M, Nout), x.dtype),
        grid=(pl.cdiv(M, bm),),
        in_specs=[pl.BlockSpec((bm, K), lambda i: (i, 0)),
                  pl.BlockSpec((K, Nout), lambda i: (0, 0)),
                  pl.BlockSpec((1, Nout), lambda i: (0, 0))],
        out_specs=pl.BlockSpec((bm, Nout), lambda i: (i, 0)),
        compiler_params=_cparams(1),
    )(x, w, b.reshape(1, Nout))


def _add_linear_kernel(x_ref, pos_ref, w_ref, b_ref, o_ref):
    xp = (x_ref[...] + pos_ref[...]).astype(MXU_DTYPE)
    y = jnp.dot(xp, w_ref[...].astype(MXU_DTYPE),
                preferred_element_type=jnp.float32) + b_ref[...]
    o_ref[...] = y.astype(o_ref.dtype)


def pallas_add_linear(x, pos, w, b):
    # (x + pos) @ w + b  — fuses the with_pos_embed add into the projection.
    M, K = x.shape
    Nout = w.shape[1]
    bm = _block_m(M)
    return pl.pallas_call(
        _add_linear_kernel,
        out_shape=jax.ShapeDtypeStruct((M, Nout), x.dtype),
        grid=(pl.cdiv(M, bm),),
        in_specs=[pl.BlockSpec((bm, K), lambda i: (i, 0)),
                  pl.BlockSpec((bm, K), lambda i: (i, 0)),
                  pl.BlockSpec((K, Nout), lambda i: (0, 0)),
                  pl.BlockSpec((1, Nout), lambda i: (0, 0))],
        out_specs=pl.BlockSpec((bm, Nout), lambda i: (i, 0)),
        compiler_params=_cparams(1),
    )(x, pos, w, b.reshape(1, Nout))


def _linear_res_ln_kernel(x_ref, w_ref, b_ref, res_ref, g_ref, beta_ref, o_ref):
    # LayerNorm(residual + (x @ w + b)) in one pass (no HBM round trip).
    y = jnp.dot(x_ref[...].astype(MXU_DTYPE), w_ref[...].astype(MXU_DTYPE),
                preferred_element_type=jnp.float32) + b_ref[...]
    y = y + res_ref[...].astype(jnp.float32)
    o_ref[...] = _layernorm(y, g_ref[...], beta_ref[...]).astype(o_ref.dtype)


def pallas_linear_res_ln(x, w, b, residual, gamma, beta):
    M, K = x.shape
    Nout = w.shape[1]
    bm = _block_m(M)
    return pl.pallas_call(
        _linear_res_ln_kernel,
        out_shape=jax.ShapeDtypeStruct((M, Nout), x.dtype),
        grid=(pl.cdiv(M, bm),),
        in_specs=[pl.BlockSpec((bm, K), lambda i: (i, 0)),
                  pl.BlockSpec((K, Nout), lambda i: (0, 0)),
                  pl.BlockSpec((1, Nout), lambda i: (0, 0)),
                  pl.BlockSpec((bm, Nout), lambda i: (i, 0)),
                  pl.BlockSpec((1, Nout), lambda i: (0, 0)),
                  pl.BlockSpec((1, Nout), lambda i: (0, 0))],
        out_specs=pl.BlockSpec((bm, Nout), lambda i: (i, 0)),
        compiler_params=_cparams(1),
    )(x, w, b.reshape(1, Nout), residual, gamma.reshape(1, Nout), beta.reshape(1, Nout))


# -------------------- fused self-attention block ('sa') ----------------------

def _sa_block_kernel(x_ref, pos_ref, wqk_ref, bqk_ref, wv_ref, bv_ref,
                     wo_ref, bo_ref, g_ref, beta_ref, o_ref,
                     *, n_heads, head_dim, scale):
    # One batch element per grid step; q = k = x + pos, v = x; full MHA +
    # out-proj + residual + LayerNorm without leaving VMEM.
    x = x_ref[0]                                                     # (Lq, C) f32
    xp = (x + pos_ref[0]).astype(MXU_DTYPE)
    qk = jnp.dot(xp, wqk_ref[...].astype(MXU_DTYPE),
                 preferred_element_type=jnp.float32) + bqk_ref[...]  # (Lq, 2C)
    v = jnp.dot(x.astype(MXU_DTYPE), wv_ref[...].astype(MXU_DTYPE),
                preferred_element_type=jnp.float32) + bv_ref[...]    # (Lq, C)
    C = n_heads * head_dim
    outs = []
    for h in range(n_heads):
        qh = qk[:, h * head_dim:(h + 1) * head_dim].astype(MXU_DTYPE)
        kh = qk[:, C + h * head_dim:C + (h + 1) * head_dim].astype(MXU_DTYPE)
        vh = v[:, h * head_dim:(h + 1) * head_dim].astype(MXU_DTYPE)
        s = jax.lax.dot_general(qh, kh, (((1,), (1,)), ((), ())),
                                preferred_element_type=jnp.float32) * scale
        s = s - jnp.max(s, axis=-1, keepdims=True)
        p = jnp.exp(s)
        p = p * pl.reciprocal(jnp.sum(p, axis=-1, keepdims=True), approx=True)
        outs.append(jnp.dot(p.astype(MXU_DTYPE), vh,
                            preferred_element_type=jnp.float32))
    attn = jnp.concatenate(outs, axis=-1)                            # (Lq, C) f32
    y = jnp.dot(attn.astype(MXU_DTYPE), wo_ref[...].astype(MXU_DTYPE),
                preferred_element_type=jnp.float32) + bo_ref[...]
    y = y + x.astype(jnp.float32)
    o_ref[0] = _layernorm(y, g_ref[...], beta_ref[...]).astype(o_ref.dtype)


def pallas_self_attention_block(x, pos, wqk, bqk, wv, bv, wo, bo, gamma, beta, n_heads):
    N, Lq, C = x.shape
    head_dim = C // n_heads
    C2 = wqk.shape[1]
    return pl.pallas_call(
        functools.partial(_sa_block_kernel, n_heads=n_heads, head_dim=head_dim,
                          scale=1.0 / math.sqrt(head_dim)),
        out_shape=jax.ShapeDtypeStruct((N, Lq, C), x.dtype),
        grid=(N,),
        in_specs=[pl.BlockSpec((1, Lq, C), lambda i: (i, 0, 0)),
                  pl.BlockSpec((1, Lq, C), lambda i: (i, 0, 0)),
                  pl.BlockSpec((C, C2), lambda i: (0, 0)),
                  pl.BlockSpec((1, C2), lambda i: (0, 0)),
                  pl.BlockSpec((C, C), lambda i: (0, 0)),
                  pl.BlockSpec((1, C), lambda i: (0, 0)),
                  pl.BlockSpec((C, C), lambda i: (0, 0)),
                  pl.BlockSpec((1, C), lambda i: (0, 0)),
                  pl.BlockSpec((1, C), lambda i: (0, 0)),
                  pl.BlockSpec((1, C), lambda i: (0, 0))],
        out_specs=pl.BlockSpec((1, Lq, C), lambda i: (i, 0, 0)),
        compiler_params=_cparams(1),
    )(x, pos, wqk, bqk.reshape(1, C2), wv, bv.reshape(1, C),
      wo, bo.reshape(1, C), gamma.reshape(1, C), beta.reshape(1, C))


# ----------------------------- FFN ('ffn') -----------------------------------

def _ffn_kernel(x_ref, w1_ref, b1_ref, w2_ref, b2_ref, g_ref, beta_ref, o_ref):
    # linear1 -> ReLU -> linear2 -> residual -> LayerNorm; hidden stays in VMEM/vregs.
    x = x_ref[...]
    h = jnp.dot(x.astype(MXU_DTYPE), w1_ref[...].astype(MXU_DTYPE),
                preferred_element_type=jnp.float32) + b1_ref[...]
    h = jnp.maximum(h, 0.0)
    y = jnp.dot(h.astype(MXU_DTYPE), w2_ref[...].astype(MXU_DTYPE),
                preferred_element_type=jnp.float32) + b2_ref[...]
    y = y + x.astype(jnp.float32)
    o_ref[...] = _layernorm(y, g_ref[...], beta_ref[...]).astype(o_ref.dtype)


def pallas_ffn(x, w1, b1, w2, b2, gamma, beta):
    M, C = x.shape
    F = w1.shape[1]
    bm = _block_m(M, 256)
    return pl.pallas_call(
        _ffn_kernel,
        out_shape=jax.ShapeDtypeStruct((M, C), x.dtype),
        grid=(pl.cdiv(M, bm),),
        in_specs=[pl.BlockSpec((bm, C), lambda i: (i, 0)),
                  pl.BlockSpec((C, F), lambda i: (0, 0)),
                  pl.BlockSpec((1, F), lambda i: (0, 0)),
                  pl.BlockSpec((F, C), lambda i: (0, 0)),
                  pl.BlockSpec((1, C), lambda i: (0, 0)),
                  pl.BlockSpec((1, C), lambda i: (0, 0)),
                  pl.BlockSpec((1, C), lambda i: (0, 0))],
        out_specs=pl.BlockSpec((bm, C), lambda i: (i, 0)),
        compiler_params=_cparams(1),
    )(x, w1, b1.reshape(1, F), w2, b2.reshape(1, C),
      gamma.reshape(1, C), beta.reshape(1, C))


# --------------------- deformable-attention combine kernel -------------------

def _deform_combine_kernel(attn_ref, sampled_ref, o_ref):
    # softmax over L*P per (query, head) row, then weighted sum of bilinear samples.
    a = attn_ref[...]                                            # (bm, LP)
    a = a - jnp.max(a, axis=-1, keepdims=True)
    a = jnp.exp(a)
    a = a * pl.reciprocal(jnp.sum(a, axis=-1, keepdims=True), approx=True)
    o_ref[...] = jnp.sum(a[:, :, None] * sampled_ref[...].astype(jnp.float32),
                         axis=1).astype(o_ref.dtype)


def pallas_deform_combine(attn, sampled):
    M, LP = attn.shape
    Dh = sampled.shape[-1]
    bm = _block_m(M, 256)
    return pl.pallas_call(
        _deform_combine_kernel,
        out_shape=jax.ShapeDtypeStruct((M, Dh), sampled.dtype),
        grid=(pl.cdiv(M, bm),),
        in_specs=[pl.BlockSpec((bm, LP), lambda i: (i, 0)),
                  pl.BlockSpec((bm, LP, Dh), lambda i: (i, 0, 0))],
        out_specs=pl.BlockSpec((bm, Dh), lambda i: (i, 0)),
        compiler_params=_cparams(1),
    )(attn, sampled)


# ------------------------- MSDeformAttn (cross attn) ------------------------

def ms_deform_attn_sample(params, x, pos, ref_pts, mem_2d, spatial_shapes_py,
                          N, Lq, Len_in, n_heads, n_levels, n_points):
    # Returns the pre-output-proj attention result, shape (N*Lq, C); the output
    # projection is fused with residual+LayerNorm by the caller.
    C = x.shape[1]
    Dh = C // n_heads
    HLP = n_heads * n_levels * n_points

    # value projection (tiled Pallas matmul), then head-major layout for the gather
    value = pallas_linear(mem_2d, params["value_proj_w"], params["value_proj_b"])
    value = value.reshape(N, Len_in, n_heads, Dh)
    value = jnp.transpose(value, (0, 2, 1, 3)).reshape(N * n_heads, Len_in, Dh)

    # fused (pos-add + sampling_offsets + attention_weights) projection
    proj = pallas_add_linear(x, pos, params["offattn_w"], params["offattn_b"])   # (N*Lq, 3*HLP)
    offsets = proj[:, :2 * HLP].reshape(N, Lq, n_heads, n_levels, n_points, 2)
    attn_logits = proj[:, 2 * HLP:].reshape(N, Lq, n_heads, n_levels * n_points)

    spatial = jnp.asarray(spatial_shapes_py, dtype=jnp.float32)                  # (L, 2) = (H, W)
    normalizer = jnp.stack([spatial[:, 1], spatial[:, 0]], axis=-1)              # (W, H)
    loc = (ref_pts[:, :, None, :, None, :]
           + offsets / normalizer[None, None, None, :, None, :])                 # (N,Lq,Hh,L,P,2)
    loc = jnp.transpose(loc, (0, 2, 1, 3, 4, 5)).reshape(N * n_heads, Lq, n_levels, n_points, 2)

    starts = [0]
    for (h_l, w_l) in spatial_shapes_py[:-1]:
        starts.append(starts[-1] + h_l * w_l)

    # TODO(synk): the data-dependent bilinear gather (F.grid_sample) stays in JAX glue;
    # the 4-corner weighted sum is folded here so Pallas only sees (M, L*P, Dh).
    sampled_levels = []
    for lid in range(n_levels):
        H_l, W_l = int(spatial_shapes_py[lid][0]), int(spatial_shapes_py[lid][1])
        v_l = value[:, starts[lid]:starts[lid] + H_l * W_l]                      # (N*Hh, HW, Dh)
        loc_l = loc[:, :, lid]                                                   # (N*Hh, Lq, P, 2)
        gx = 2.0 * loc_l[..., 0] - 1.0                                           # grid_sample convention
        gy = 2.0 * loc_l[..., 1] - 1.0
        ix = ((gx + 1.0) * W_l - 1.0) / 2.0                                      # align_corners=False
        iy = ((gy + 1.0) * H_l - 1.0) / 2.0
        x0 = jnp.floor(ix)
        y0 = jnp.floor(iy)
        x1 = x0 + 1.0
        y1 = y0 + 1.0
        lx = ix - x0
        ly = iy - y0
        sampled_l = jnp.zeros((N * n_heads, Lq * n_points, Dh), value.dtype)
        for (xc, yc, wc) in ((x0, y0, (1.0 - lx) * (1.0 - ly)),
                             (x1, y0, lx * (1.0 - ly)),
                             (x0, y1, (1.0 - lx) * ly),
                             (x1, y1, lx * ly)):
            valid = ((xc >= 0) & (xc <= W_l - 1) & (yc >= 0) & (yc <= H_l - 1)).astype(value.dtype)
            xi = jnp.clip(xc, 0, W_l - 1).astype(jnp.int32)
            yi = jnp.clip(yc, 0, H_l - 1).astype(jnp.int32)
            idx = (yi * W_l + xi).reshape(N * n_heads, Lq * n_points)
            idx_b = jnp.broadcast_to(idx[:, :, None], (N * n_heads, Lq * n_points, Dh))
            g = jnp.take_along_axis(v_l, idx_b, axis=1)                          # (N*Hh, Lq*P, Dh)
            w = (wc * valid).reshape(N * n_heads, Lq * n_points, 1)
            sampled_l = sampled_l + w * g                                        # zero-pad OOB corners
        sampled_levels.append(sampled_l.reshape(N, n_heads, Lq, n_points, Dh))
    sampled = jnp.stack(sampled_levels, axis=3)                                  # (N,Hh,Lq,L,P,Dh)

    attn_t = jnp.transpose(attn_logits, (0, 2, 1, 3))                            # (N,Hh,Lq,L*P)
    out = pallas_deform_combine(
        attn_t.reshape(N * n_heads * Lq, n_levels * n_points),
        sampled.reshape(N * n_heads * Lq, n_levels * n_points, Dh))              # (M, Dh)
    out = jnp.transpose(out.reshape(N, n_heads, Lq, Dh), (0, 2, 1, 3))           # (N, Lq, Hh, Dh)
    return out.reshape(N * Lq, C)


# ------------------------ Decoder layer forward pass -------------------------

def decoder_layer_forward(params, tgt, tgt_query_pos, tgt_reference_points, memory,
                          spatial_shapes_py, n_heads, n_levels, n_points):
    Lq, N, C = tgt.shape
    Len_in = memory.shape[0]

    # single transpose into batch-first layout for the whole layer
    x3 = jnp.transpose(tgt, (1, 0, 2))                                           # (N, Lq, C)
    pos3 = jnp.transpose(tgt_query_pos, (1, 0, 2))                               # (N, Lq, C)
    ref_pts = jnp.transpose(tgt_reference_points, (1, 0, 2, 3))                  # (N, Lq, L, 2)
    mem = jnp.transpose(memory, (1, 0, 2)).reshape(N * Len_in, C)

    # ---------------- 'sa' : self attention (single fused kernel) ----------------
    x3 = pallas_self_attention_block(
        x3, pos3, params["sa_wqk"], params["sa_bqk"], params["sa_wv"], params["sa_bv"],
        params["sa_wo"], params["sa_bo"], params["norm2_g"], params["norm2_b"], n_heads)

    x = x3.reshape(N * Lq, C)
    pos = pos3.reshape(N * Lq, C)

    # ---------------- 'ca' : deformable cross attention ----------------
    ca = ms_deform_attn_sample(params, x, pos, ref_pts, mem, spatial_shapes_py,
                               N, Lq, Len_in, n_heads, n_levels, n_points)       # (N*Lq, C)
    x = pallas_linear_res_ln(ca, params["output_proj_w"], params["output_proj_b"],
                             x, params["norm1_g"], params["norm1_b"])

    # ---------------- 'ffn' ----------------
    x = pallas_ffn(x, params["ffn_w1"], params["ffn_b1"],
                   params["ffn_w2"], params["ffn_b2"],
                   params["norm3_g"], params["norm3_b"])

    return jnp.transpose(x.reshape(N, Lq, C), (1, 0, 2))                         # (Lq, N, C)


# ----------------------------- parameter init --------------------------------

def init_params(key, C, F, n_heads, n_levels, n_points):
    HLP = n_heads * n_levels * n_points
    shapes = {
        "sa_wqk": (C, 2 * C), "sa_bqk": (2 * C,),
        "sa_wv": (C, C), "sa_bv": (C,),
        "sa_wo": (C, C), "sa_bo": (C,),
        "norm1_g": (C,), "norm1_b": (C,),
        "norm2_g": (C,), "norm2_b": (C,),
        "norm3_g": (C,), "norm3_b": (C,),
        "value_proj_w": (C, C), "value_proj_b": (C,),
        "offattn_w": (C, 3 * HLP), "offattn_b": (3 * HLP,),
        "output_proj_w": (C, C), "output_proj_b": (C,),
        "ffn_w1": (C, F), "ffn_b1": (F,),
        "ffn_w2": (F, C), "ffn_b2": (C,),
    }
    names = sorted(shapes.keys())
    keys = jax.random.split(key, len(names))
    params = {}
    for name, k in zip(names, keys):
        shp = shapes[name]
        if name.startswith("norm") and name.endswith("_g"):
            params[name] = jnp.ones(shp, jnp.float32)
        elif name.startswith("norm") and name.endswith("_b"):
            params[name] = jnp.zeros(shp, jnp.float32)
        elif "_w" in name:
            params[name] = (0.05 * jax.random.normal(k, shp)).astype(jnp.float32)
        else:
            params[name] = (0.01 * jax.random.normal(k, shp)).astype(jnp.float32)
    return params


# ----------------------------------- main -------------------------------------

if __name__ == "__main__":
    # small config consistent with the module (hidden, heads, levels, points, ffn)
    C = 32            # hidden_inplanes
    F = 64            # feedforward_planes
    n_heads = 4
    n_levels = 2      # feature_level_nums
    n_points = 2      # point_nums
    Lq = 8            # number of queries
    N = 2             # batch
    spatial_shapes_py = [(8, 8), (4, 4)]
    Len_in = sum(h * w for h, w in spatial_shapes_py)   # 80

    key = jax.random.PRNGKey(0)
    k_param, k_tgt, k_pos, k_mem, k_ref = jax.random.split(key, 5)
    params = init_params(k_param, C, F, n_heads, n_levels, n_points)

    tgt = jax.random.normal(k_tgt, (Lq, N, C), dtype=jnp.float32)
    tgt_query_pos = jax.random.normal(k_pos, (Lq, N, C), dtype=jnp.float32)
    memory = jax.random.normal(k_mem, (Len_in, N, C), dtype=jnp.float32)
    tgt_reference_points = jax.random.uniform(k_ref, (Lq, N, n_levels, 2), dtype=jnp.float32)

    out = decoder_layer_forward(params, tgt, tgt_query_pos, tgt_reference_points, memory,
                                spatial_shapes_py, n_heads, n_levels, n_points)
    out = jax.block_until_ready(out)
    assert out.shape == (Lq, N, C)
    assert jnp.all(jnp.isfinite(out))
    print("KERNEL_OK")
</pallas_src>

<mosaic_0001>
module attributes {stable_mosaic.version = 11 : i64} {
  func.func @_sa_block_kernel(%arg0: i32, %arg1: memref<1x8x32xf32, #tpu.memory_space<vmem>>, %arg2: memref<1x8x32xf32, #tpu.memory_space<vmem>>, %arg3: memref<32x64xf32, #tpu.memory_space<vmem>>, %arg4: memref<1x64xf32, #tpu.memory_space<vmem>>, %arg5: memref<32x32xf32, #tpu.memory_space<vmem>>, %arg6: memref<1x32xf32, #tpu.memory_space<vmem>>, %arg7: memref<32x32xf32, #tpu.memory_space<vmem>>, %arg8: memref<1x32xf32, #tpu.memory_space<vmem>>, %arg9: memref<1x32xf32, #tpu.memory_space<vmem>>, %arg10: memref<1x32xf32, #tpu.memory_space<vmem>>, %arg11: memref<1x8x32xf32, #tpu.memory_space<vmem>>) attributes {dimension_semantics = [#tpu.dimension_semantics<parallel>], iteration_bounds = array<i64: 2>, scalar_prefetch = 0 : i64, scratch_operands = 0 : i64, tpu.core_type = #tpu.core_type<tc>, window_params = [{transform_indices = @transform_0, window_bounds = array<i64: 1, 8, 32>}, {transform_indices = @transform_1, window_bounds = array<i64: 1, 8, 32>}, {pipeline_mode = #tpu.pipeline_mode<synchronous>, transform_indices = @transform_2, window_bounds = array<i64: 32, 64>}, {pipeline_mode = #tpu.pipeline_mode<synchronous>, transform_indices = @transform_3, window_bounds = array<i64: 1, 64>}, {pipeline_mode = #tpu.pipeline_mode<synchronous>, transform_indices = @transform_4, window_bounds = array<i64: 32, 32>}, {pipeline_mode = #tpu.pipeline_mode<synchronous>, transform_indices = @transform_5, window_bounds = array<i64: 1, 32>}, {pipeline_mode = #tpu.pipeline_mode<synchronous>, transform_indices = @transform_6, window_bounds = array<i64: 32, 32>}, {pipeline_mode = #tpu.pipeline_mode<synchronous>, transform_indices = @transform_7, window_bounds = array<i64: 1, 32>}, {pipeline_mode = #tpu.pipeline_mode<synchronous>, transform_indices = @transform_8, window_bounds = array<i64: 1, 32>}, {pipeline_mode = #tpu.pipeline_mode<synchronous>, transform_indices = @transform_9, window_bounds = array<i64: 1, 32>}, {transform_indices = @transform_10, window_bounds = array<i64: 1, 8, 32>}]} {
    %c0 = arith.constant 0 : index
    %c0_0 = arith.constant 0 : index
    %c0_1 = arith.constant 0 : index
    %0 = vector.load %arg1[%c0, %c0_0, %c0_1] : memref<1x8x32xf32, #tpu.memory_space<vmem>>, vector<1x8x32xf32>
    %1 = vector.shape_cast %0 : vector<1x8x32xf32> to vector<8x32xf32>
    %c0_2 = arith.constant 0 : index
    %c0_3 = arith.constant 0 : index
    %c0_4 = arith.constant 0 : index
    %2 = vector.load %arg2[%c0_2, %c0_3, %c0_4] : memref<1x8x32xf32, #tpu.memory_space<vmem>>, vector<1x8x32xf32>
    %3 = vector.shape_cast %2 : vector<1x8x32xf32> to vector<8x32xf32>
    %4 = arith.addf %1, %3 : vector<8x32xf32>
    %5 = arith.truncf %4 : vector<8x32xf32> to vector<8x32xbf16>
    %c0_5 = arith.constant 0 : index
    %c0_6 = arith.constant 0 : index
    %6 = vector.load %arg3[%c0_5, %c0_6] : memref<32x64xf32, #tpu.memory_space<vmem>>, vector<32x64xf32>
    %7 = arith.truncf %6 : vector<32x64xf32> to vector<32x64xbf16>
    %cst = arith.constant dense<0.000000e+00> : vector<8x64xf32>
    %8 = tpu.matmul %5, %7, %cst {dimension_numbers = #tpu.dot_dimension_numbers<[1], [0], [0], [1], [0, 0, 1, 1], [], []>} : vector<8x32xbf16>, vector<32x64xbf16>, vector<8x64xf32> -> vector<8x64xf32>
    %c0_7 = arith.constant 0 : index
    %c0_8 = arith.constant 0 : index
    %9 = vector.load %arg4[%c0_7, %c0_8] : memref<1x64xf32, #tpu.memory_space<vmem>>, vector<1x64xf32>
    %10 = vector.broadcast %9 : vector<1x64xf32> to vector<8x64xf32>
    %11 = arith.addf %8, %10 : vector<8x64xf32>
    %12 = arith.truncf %1 : vector<8x32xf32> to vector<8x32xbf16>
    %c0_9 = arith.constant 0 : index
    %c0_10 = arith.constant 0 : index
    %13 = vector.load %arg5[%c0_9, %c0_10] : memref<32x32xf32, #tpu.memory_space<vmem>>, vector<32x32xf32>
    %14 = arith.truncf %13 : vector<32x32xf32> to vector<32x32xbf16>
    %cst_11 = arith.constant dense<0.000000e+00> : vector<8x32xf32>
    %15 = tpu.matmul %12, %14, %cst_11 {dimension_numbers = #tpu.dot_dimension_numbers<[1], [0], [0], [1], [0, 0, 1, 1], [], []>} : vector<8x32xbf16>, vector<32x32xbf16>, vector<8x32xf32> -> vector<8x32xf32>
    %c0_12 = arith.constant 0 : index
    %c0_13 = arith.constant 0 : index
    %16 = vector.load %arg6[%c0_12, %c0_13] : memref<1x32xf32, #tpu.memory_space<vmem>>, vector<1x32xf32>
    %17 = vector.broadcast %16 : vector<1x32xf32> to vector<8x32xf32>
    %18 = arith.addf %15, %17 : vector<8x32xf32>
    %19 = vector.extract_strided_slice %11 {offsets = [0, 0], sizes = [8, 8], strides = [1, 1]} : vector<8x64xf32> to vector<8x8xf32>
    %20 = arith.truncf %19 : vector<8x8xf32> to vector<8x8xbf16>
    %21 = vector.extract_strided_slice %11 {offsets = [0, 32], sizes = [8, 8], strides = [1, 1]} : vector<8x64xf32> to vector<8x8xf32>
    %22 = arith.truncf %21 : vector<8x8xf32> to vector<8x8xbf16>
    %23 = vector.extract_strided_slice %18 {offsets = [0, 0], sizes = [8, 8], strides = [1, 1]} : vector<8x32xf32> to vector<8x8xf32>
    %24 = arith.truncf %23 : vector<8x8xf32> to vector<8x8xbf16>
    %cst_14 = arith.constant dense<0.000000e+00> : vector<8x8xf32>
    %25 = tpu.matmul %20, %22, %cst_14 {dimension_numbers = #tpu.dot_dimension_numbers<[1], [1], [0], [0], [0, 0, 1, 0], [], []>} : vector<8x8xbf16>, vector<8x8xbf16>, vector<8x8xf32> -> vector<8x8xf32>
    %cst_15 = arith.constant 0.353553385 : f32
    %26 = vector.broadcast %cst_15 : f32 to vector<8x8xf32>
    %27 = arith.mulf %25, %26 : vector<8x8xf32>
    %cst_16 = arith.constant dense<0xFF800000> : vector<8xf32>
    %28 = vector.multi_reduction <maximumf>, %27, %cst_16 [1] : vector<8x8xf32> to vector<8xf32>
    %29 = vector.shape_cast %28 : vector<8xf32> to vector<8x1xf32>
    %30 = vector.broadcast %29 : vector<8x1xf32> to vector<8x8xf32>
    %31 = arith.subf %27, %30 : vector<8x8xf32>
    %32 = math.exp %31 : vector<8x8xf32>
    %cst_17 = arith.constant dense<0.000000e+00> : vector<8xf32>
    %33 = vector.multi_reduction <add>, %32, %cst_17 [1] : vector<8x8xf32> to vector<8xf32>
    %34 = vector.shape_cast %33 : vector<8xf32> to vector<8x1xf32>
    %35 = tpu.reciprocal %34 {approx = true} : vector<8x1xf32> -> vector<8x1xf32>
    %36 = vector.broadcast %35 : vector<8x1xf32> to vector<8x8xf32>
    %37 = arith.mulf %32, %36 : vector<8x8xf32>
    %38 = arith.truncf %37 : vector<8x8xf32> to vector<8x8xbf16>
    %cst_18 = arith.constant dense<0.000000e+00> : vector<8x8xf32>
    %39 = tpu.matmul %38, %24, %cst_18 {dimension_numbers = #tpu.dot_dimension_numbers<[1], [0], [0], [1], [0, 0, 1, 1], [], []>} : vector<8x8xbf16>, vector<8x8xbf16>, vector<8x8xf32> -> vector<8x8xf32>
    %40 = vector.extract_strided_slice %11 {offsets = [0, 8], sizes = [8, 8], strides = [1, 1]} : vector<8x64xf32> to vector<8x8xf32>
    %41 = arith.truncf %40 : vector<8x8xf32> to vector<8x8xbf16>
    %42 = vector.extract_strided_slice %11 {offsets = [0, 40], sizes = [8, 8], strides = [1, 1]} : vector<8x64xf32> to vector<8x8xf32>
    %43 = arith.truncf %42 : vector<8x8xf32> to vector<8x8xbf16>
    %44 = vector.extract_strided_slice %18 {offsets = [0, 8], sizes = [8, 8], strides = [1, 1]} : vector<8x32xf32> to vector<8x8xf32>
    %45 = arith.truncf %44 : vector<8x8xf32> to vector<8x8xbf16>
    %cst_19 = arith.constant dense<0.000000e+00> : vector<8x8xf32>
    %46 = tpu.matmul %41, %43, %cst_19 {dimension_numbers = #tpu.dot_dimension_numbers<[1], [1], [0], [0], [0, 0, 1, 0], [], []>} : vector<8x8xbf16>, vector<8x8xbf16>, vector<8x8xf32> -> vector<8x8xf32>
    %cst_20 = arith.constant 0.353553385 : f32
    %47 = vector.broadcast %cst_20 : f32 to vector<8x8xf32>
    %48 = arith.mulf %46, %47 : vector<8x8xf32>
    %cst_21 = arith.constant dense<0xFF800000> : vector<8xf32>
    %49 = vector.multi_reduction <maximumf>, %48, %cst_21 [1] : vector<8x8xf32> to vector<8xf32>
    %50 = vector.shape_cast %49 : vector<8xf32> to vector<8x1xf32>
    %51 = vector.broadcast %50 : vector<8x1xf32> to vector<8x8xf32>
    %52 = arith.subf %48, %51 : vector<8x8xf32>
    %53 = math.exp %52 : vector<8x8xf32>
    %cst_22 = arith.constant dense<0.000000e+00> : vector<8xf32>
    %54 = vector.multi_reduction <add>, %53, %cst_22 [1] : vector<8x8xf32> to vector<8xf32>
    %55 = vector.shape_cast %54 : vector<8xf32> to vector<8x1xf32>
    %56 = tpu.reciprocal %55 {approx = true} : vector<8x1xf32> -> vector<8x1xf32>
    %57 = vector.broadcast %56 : vector<8x1xf32> to vector<8x8xf32>
    %58 = arith.mulf %53, %57 : vector<8x8xf32>
    %59 = arith.truncf %58 : vector<8x8xf32> to vector<8x8xbf16>
    %cst_23 = arith.constant dense<0.000000e+00> : vector<8x8xf32>
    %60 = tpu.matmul %59, %45, %cst_23 {dimension_numbers = #tpu.dot_dimension_numbers<[1], [0], [0], [1], [0, 0, 1, 1], [], []>} : vector<8x8xbf16>, vector<8x8xbf16>, vector<8x8xf32> -> vector<8x8xf32>
    %61 = vector.extract_strided_slice %11 {offsets = [0, 16], sizes = [8, 8], strides = [1, 1]} : vector<8x64xf32> to vector<8x8xf32>
    %62 = arith.truncf %61 : vector<8x8xf32> to vector<8x8xbf16>
    %63 = vector.extract_strided_slice %11 {offsets = [0, 48], sizes = [8, 8], strides = [1, 1]} : vector<8x64xf32> to vector<8x8xf32>
    %64 = arith.truncf %63 : vector<8x8xf32> to vector<8x8xbf16>
    %65 = vector.extract_strided_slice %18 {offsets = [0, 16], sizes = [8, 8], strides = [1, 1]} : vector<8x32xf32> to vector<8x8xf32>
    %66 = arith.truncf %65 : vector<8x8xf32> to vector<8x8xbf16>
    %cst_24 = arith.constant dense<0.000000e+00> : vector<8x8xf32>
    %67 = tpu.matmul %62, %64, %cst_24 {dimension_numbers = #tpu.dot_dimension_numbers<[1], [1], [0], [0], [0, 0, 1, 0], [], []>} : vector<8x8xbf16>, vector<8x8xbf16>, vector<8x8xf32> -> vector<8x8xf32>
    %cst_25 = arith.constant 0.353553385 : f32
    %68 = vector.broadcast %cst_25 : f32 to vector<8x8xf32>
    %69 = arith.mulf %67, %68 : vector<8x8xf32>
    %cst_26 = arith.constant dense<0xFF800000> : vector<8xf32>
    %70 = vector.multi_reduction <maximumf>, %69, %cst_26 [1] : vector<8x8xf32> to vector<8xf32>
    %71 = vector.shape_cast %70 : vector<8xf32> to vector<8x1xf32>
    %72 = vector.broadcast %71 : vector<8x1xf32> to vector<8x8xf32>
    %73 = arith.subf %69, %72 : vector<8x8xf32>
    %74 = math.exp %73 : vector<8x8xf32>
    %cst_27 = arith.constant dense<0.000000e+00> : vector<8xf32>
    %75 = vector.multi_reduction <add>, %74, %cst_27 [1] : vector<8x8xf32> to vector<8xf32>
    %76 = vector.shape_cast %75 : vector<8xf32> to vector<8x1xf32>
    %77 = tpu.reciprocal %76 {approx = true} : vector<8x1xf32> -> vector<8x1xf32>
    %78 = vector.broadcast %77 : vector<8x1xf32> to vector<8x8xf32>
    %79 = arith.mulf %74, %78 : vector<8x8xf32>
    %80 = arith.truncf %79 : vector<8x8xf32> to vector<8x8xbf16>
    %cst_28 = arith.constant dense<0.000000e+00> : vector<8x8xf32>
    %81 = tpu.matmul %80, %66, %cst_28 {dimension_numbers = #tpu.dot_dimension_numbers<[1], [0], [0], [1], [0, 0, 1, 1], [], []>} : vector<8x8xbf16>, vector<8x8xbf16>, vector<8x8xf32> -> vector<8x8xf32>
    %82 = vector.extract_strided_slice %11 {offsets = [0, 24], sizes = [8, 8], strides = [1, 1]} : vector<8x64xf32> to vector<8x8xf32>
    %83 = arith.truncf %82 : vector<8x8xf32> to vector<8x8xbf16>
    %84 = vector.extract_strided_slice %11 {offsets = [0, 56], sizes = [8, 8], strides = [1, 1]} : vector<8x64xf32> to vector<8x8xf32>
    %85 = arith.truncf %84 : vector<8x8xf32> to vector<8x8xbf16>
    %86 = vector.extract_strided_slice %18 {offsets = [0, 24], sizes = [8, 8], strides = [1, 1]} : vector<8x32xf32> to vector<8x8xf32>
    %87 = arith.truncf %86 : vector<8x8xf32> to vector<8x8xbf16>
    %cst_29 = arith.constant dense<0.000000e+00> : vector<8x8xf32>
    %88 = tpu.matmul %83, %85, %cst_29 {dimension_numbers = #tpu.dot_dimension_numbers<[1], [1], [0], [0], [0, 0, 1, 0], [], []>} : vector<8x8xbf16>, vector<8x8xbf16>, vector<8x8xf32> -> vector<8x8xf32>
    %cst_30 = arith.constant 0.353553385 : f32
    %89 = vector.broadcast %cst_30 : f32 to vector<8x8xf32>
    %90 = arith.mulf %88, %89 : vector<8x8xf32>
    %cst_31 = arith.constant dense<0xFF800000> : vector<8xf32>
    %91 = vector.multi_reduction <maximumf>, %90, %cst_31 [1] : vector<8x8xf32> to vector<8xf32>
    %92 = vector.shape_cast %91 : vector<8xf32> to vector<8x1xf32>
    %93 = vector.broadcast %92 : vector<8x1xf32> to vector<8x8xf32>
    %94 = arith.subf %90, %93 : vector<8x8xf32>
    %95 = math.exp %94 : vector<8x8xf32>
    %cst_32 = arith.constant dense<0.000000e+00> : vector<8xf32>
    %96 = vector.multi_reduction <add>, %95, %cst_32 [1] : vector<8x8xf32> to vector<8xf32>
    %97 = vector.shape_cast %96 : vector<8xf32> to vector<8x1xf32>
    %98 = tpu.reciprocal %97 {approx = true} : vector<8x1xf32> -> vector<8x1xf32>
    %99 = vector.broadcast %98 : vector<8x1xf32> to vector<8x8xf32>
    %100 = arith.mulf %95, %99 : vector<8x8xf32>
    %101 = arith.truncf %100 : vector<8x8xf32> to vector<8x8xbf16>
    %cst_33 = arith.constant dense<0.000000e+00> : vector<8x8xf32>
    %102 = tpu.matmul %101, %87, %cst_33 {dimension_numbers = #tpu.dot_dimension_numbers<[1], [0], [0], [1], [0, 0, 1, 1], [], []>} : vector<8x8xbf16>, vector<8x8xbf16>, vector<8x8xf32> -> vector<8x8xf32>
    %103 = tpu.concatenate %39, %60, %81, %102 in 1 : vector<8x8xf32>, vector<8x8xf32>, vector<8x8xf32>, vector<8x8xf32> -> vector<8x32xf32>
    %104 = arith.truncf %103 : vector<8x32xf32> to vector<8x32xbf16>
    %c0_34 = arith.constant 0 : index
    %c0_35 = arith.constant 0 : index
    %105 = vector.load %arg7[%c0_34, %c0_35] : memref<32x32xf32, #tpu.memory_space<vmem>>, vector<32x32xf32>
    %106 = arith.truncf %105 : vector<32x32xf32> to vector<32x32xbf16>
    %cst_36 = arith.constant dense<0.000000e+00> : vector<8x32xf32>
    %107 = tpu.matmul %104, %106, %cst_36 {dimension_numbers = #tpu.dot_dimension_numbers<[1], [0], [0], [1], [0, 0, 1, 1], [], []>} : vector<8x32xbf16>, vector<32x32xbf16>, vector<8x32xf32> -> vector<8x32xf32>
    %c0_37 = arith.constant 0 : index
    %c0_38 = arith.constant 0 : index
    %108 = vector.load %arg8[%c0_37, %c0_38] : memref<1x32xf32, #tpu.memory_space<vmem>>, vector<1x32xf32>
    %109 = vector.broadcast %108 : vector<1x32xf32> to vector<8x32xf32>
    %110 = arith.addf %107, %109 : vector<8x32xf32>
    %111 = arith.addf %110, %1 : vector<8x32xf32>
    %c0_39 = arith.constant 0 : index
    %c0_40 = arith.constant 0 : index
    %112 = vector.load %arg9[%c0_39, %c0_40] : memref<1x32xf32, #tpu.memory_space<vmem>>, vector<1x32xf32>
    %c0_41 = arith.constant 0 : index
    %c0_42 = arith.constant 0 : index
    %113 = vector.load %arg10[%c0_41, %c0_42] : memref<1x32xf32, #tpu.memory_space<vmem>>, vector<1x32xf32>
    %cst_43 = arith.constant dense<0.000000e+00> : vector<8xf32>
    %114 = vector.multi_reduction <add>, %111, %cst_43 [1] : vector<8x32xf32> to vector<8xf32>
    %115 = vector.shape_cast %114 : vector<8xf32> to vector<8x1xf32>
    %cst_44 = arith.constant 3.200000e+01 : f32
    %116 = vector.broadcast %cst_44 : f32 to vector<8x1xf32>
    %117 = arith.divf %115, %116 : vector<8x1xf32>
    %118 = vector.broadcast %117 : vector<8x1xf32> to vector<8x32xf32>
    %119 = arith.subf %111, %118 : vector<8x32xf32>
    %120 = arith.mulf %119, %119 : vector<8x32xf32>
    %cst_45 = arith.constant dense<0.000000e+00> : vector<8xf32>
    %121 = vector.multi_reduction <add>, %120, %cst_45 [1] : vector<8x32xf32> to vector<8xf32>
    %122 = vector.shape_cast %121 : vector<8xf32> to vector<8x1xf32>
    %cst_46 = arith.constant 3.200000e+01 : f32
    %123 = vector.broadcast %cst_46 : f32 to vector<8x1xf32>
    %124 = arith.divf %122, %123 : vector<8x1xf32>
    %125 = vector.broadcast %117 : vector<8x1xf32> to vector<8x32xf32>
    %126 = arith.subf %111, %125 : vector<8x32xf32>
    %cst_47 = arith.constant 9.99999974E-6 : f32
    %127 = vector.broadcast %cst_47 : f32 to vector<8x1xf32>
    %128 = arith.addf %124, %127 : vector<8x1xf32>
    %129 = math.rsqrt %128 : vector<8x1xf32>
    %130 = vector.broadcast %129 : vector<8x1xf32> to vector<8x32xf32>
    %131 = arith.mulf %126, %130 : vector<8x32xf32>
    %132 = vector.broadcast %112 : vector<1x32xf32> to vector<8x32xf32>
    %133 = arith.mulf %131, %132 : vector<8x32xf32>
    %134 = vector.broadcast %113 : vector<1x32xf32> to vector<8x32xf32>
    %135 = arith.addf %133, %134 : vector<8x32xf32>
    %c0_48 = arith.constant 0 : index
    %c0_49 = arith.constant 0 : index
    %c0_50 = arith.constant 0 : index
    %136 = vector.load %arg11[%c0_48, %c0_49, %c0_50] : memref<1x8x32xf32, #tpu.memory_space<vmem>>, vector<1x8x32xf32>
    %137 = vector.shape_cast %136 : vector<1x8x32xf32> to vector<8x32xf32>
    %138 = vector.shape_cast %135 : vector<8x32xf32> to vector<1x8x32xf32>
    tpu.vector_store %arg11[%c0_48, %c0_49, %c0_50], %138 {strides = array<i32>} : memref<1x8x32xf32, #tpu.memory_space<vmem>>, vector<1x8x32xf32>,
    return
  }
  func.func @transform_0(%arg0: i32) -> (i32, i32, i32) {
    %c0_i32 = arith.constant 0 : i32
    %c0_i32_0 = arith.constant 0 : i32
    %c0_i32_1 = arith.constant 0 : i32
    return %arg0, %c0_i32, %c0_i32_0 : i32, i32, i32
  }
  func.func @transform_1(%arg0: i32) -> (i32, i32, i32) {
    %c0_i32 = arith.constant 0 : i32
    %c0_i32_0 = arith.constant 0 : i32
    %c0_i32_1 = arith.constant 0 : i32
    return %arg0, %c0_i32, %c0_i32_0 : i32, i32, i32
  }
  func.func @transform_2(%arg0: i32) -> (i32, i32) {
    %c0_i32 = arith.constant 0 : i32
    %c0_i32_0 = arith.constant 0 : i32
    %c0_i32_1 = arith.constant 0 : i32
    return %c0_i32, %c0_i32_0 : i32, i32
  }
  func.func @transform_3(%arg0: i32) -> (i32, i32) {
    %c0_i32 = arith.constant 0 : i32
    %c0_i32_0 = arith.constant 0 : i32
    %c0_i32_1 = arith.constant 0 : i32
    return %c0_i32, %c0_i32_0 : i32, i32
  }
  func.func @transform_4(%arg0: i32) -> (i32, i32) {
    %c0_i32 = arith.constant 0 : i32
    %c0_i32_0 = arith.constant 0 : i32
    %c0_i32_1 = arith.constant 0 : i32
    return %c0_i32, %c0_i32_0 : i32, i32
  }
  func.func @transform_5(%arg0: i32) -> (i32, i32) {
    %c0_i32 = arith.constant 0 : i32
    %c0_i32_0 = arith.constant 0 : i32
    %c0_i32_1 = arith.constant 0 : i32
    return %c0_i32, %c0_i32_0 : i32, i32
  }
  func.func @transform_6(%arg0: i32) -> (i32, i32) {
    %c0_i32 = arith.constant 0 : i32
    %c0_i32_0 = arith.constant 0 : i32
    %c0_i32_1 = arith.constant 0 : i32
    return %c0_i32, %c0_i32_0 : i32, i32
  }
  func.func @transform_7(%arg0: i32) -> (i32, i32) {
    %c0_i32 = arith.constant 0 : i32
    %c0_i32_0 = arith.constant 0 : i32
    %c0_i32_1 = arith.constant 0 : i32
    return %c0_i32, %c0_i32_0 : i32, i32
  }
  func.func @transform_8(%arg0: i32) -> (i32, i32) {
    %c0_i32 = arith.constant 0 : i32
    %c0_i32_0 = arith.constant 0 : i32
    %c0_i32_1 = arith.constant 0 : i32
    return %c0_i32, %c0_i32_0 : i32, i32
  }
  func.func @transform_9(%arg0: i32) -> (i32, i32) {
    %c0_i32 = arith.constant 0 : i32
    %c0_i32_0 = arith.constant 0 : i32
    %c0_i32_1 = arith.constant 0 : i32
    return %c0_i32, %c0_i32_0 : i32, i32
  }
  func.func @transform_10(%arg0: i32) -> (i32, i32, i32) {
    %c0_i32 = arith.constant 0 : i32
    %c0_i32_0 = arith.constant 0 : i32
    %c0_i32_1 = arith.constant 0 : i32
    return %arg0, %c0_i32, %c0_i32_0 : i32, i32, i32
  }
}

</mosaic_0001>

<llo_original>
// kernel: tpu_custom_call.1
$region0: #{tpu_custom_call.1}
  #allocation0 [shape = 'u32[]', space=smem, size = 0x4, offset = 0x4, fixed_abs, tag = 'smem constant byte address 0x4 - core index']
  #allocation1 [shape = 'u32[144,128]{1,0:T(1,128)}', space=vmem, size = 0x12000, scoped, tag = 'internal scratch']
  %s0 = inlined_call_operand.hbm [shape: f32[2,8,32], index: 0, kind: input, shape index: {}]
  %s1 = inlined_call_operand.hbm [shape: f32[2,8,32], index: 1, kind: input, shape index: {}]
  %s2 = inlined_call_operand.hbm [shape: f32[32,64], index: 2, kind: input, shape index: {}]
  %s3 = inlined_call_operand.vmem [shape: f32[1,64], index: 3, kind: input, shape index: {}]
  %s4 = inlined_call_operand.hbm [shape: f32[32,32], index: 4, kind: input, shape index: {}]
  %s5 = inlined_call_operand.vmem [shape: f32[1,32], index: 5, kind: input, shape index: {}]
  %s6 = inlined_call_operand.hbm [shape: f32[32,32], index: 6, kind: input, shape index: {}]
  %s7 = inlined_call_operand.vmem [shape: f32[1,32], index: 7, kind: input, shape index: {}]
  %s8 = inlined_call_operand.vmem [shape: f32[1,32], index: 8, kind: input, shape index: {}]
  %s9 = inlined_call_operand.vmem [shape: f32[1,32], index: 9, kind: input, shape index: {}]
  %s10 = inlined_call_operand.hbm [shape: f32[2,8,32], index: 10, kind: output, shape index: {}]
  %s11 = sld [smem:[#allocation0]]
  $region93: #{tpu_custom_call.1} parent=0
    _
  %s13 = ssub.s32 1, %s11
  %s14 = scalar_select 0, %s13, %s11
  $region1: #{tpu_custom_call.1} parent=0
    #allocation2 [shape = 'u8[8192]{0}', space=vmem, size = 0x2000, scoped, tag = 'input window, operand 0']
    #allocation3 [shape = 's32[2]{0}', space=sflag, size = 0x8, scoped, tag = 'scoped memory for tpu_custom_call.1']
    #allocation4 [shape = 's32[2]{0}', space=sflag, size = 0x8, scoped, tag = 'scoped memory for tpu_custom_call.1']
    #allocation5 [shape = 'u8[8192]{0}', space=vmem, size = 0x2000, scoped, tag = 'input window, operand 1']
    #allocation6 [shape = 's32[2]{0}', space=sflag, size = 0x8, scoped, tag = 'scoped memory for tpu_custom_call.1']
    #allocation7 [shape = 'u8[16384]{0}', space=vmem, size = 0x4000, scoped, tag = 'input window, operand 2, single buffered']
    #allocation8 [shape = 'u8[16384]{0}', space=vmem, size = 0x4000, scoped, tag = 'input window, operand 4, single buffered']
    #allocation9 [shape = 's32[1]{0}', space=sflag, size = 0x4, scoped, tag = 'scoped memory for tpu_custom_call.1']
    #allocation10 [shape = 'u8[16384]{0}', space=vmem, size = 0x4000, scoped, tag = 'input window, operand 6, single buffered']
    #allocation11 [shape = 'u8[8192]{0}', space=vmem, size = 0x2000, scoped, tag = 'output window, operand 0']
    %15 = vsyncpa [#allocation3], 0
    %s16 = scalar_lea.sflag [#allocation3], 1
    %17 = vsyncpa %s16, 0
    %18 = vsyncpa [#allocation6], 0
    %s19 = scalar_lea.sflag [#allocation6], 1
    %20 = vsyncpa %s19, 0
    %21 = vsyncpa [#allocation9], 0
    %22 = vsyncpa [#allocation4], 0
    %s23 = scalar_lea.sflag [#allocation4], 1
    %24 = vsyncpa %s23, 0
    loop: start=0, step=1, limit=4
    $region2: #{tpu_custom_call.1} parent=1 // loop_pre_header
      _
    $region3: #{tpu_custom_call.1} parent=1 // loop_header
      %s26 = sphi 0, %s30
      %p27 = scmp.ge.s32.totalorder %s26, 4
      %s36 = sphi 0, %s38
      %s39 = sphi 0, %s36
      %s40 = sphi 0, %s39
      %s56 = sphi 0, %s40
      %s62 = sphi 0, %s64
      %s65 = sphi 0, %s62
      %s66 = sphi 0, %s65
      %s82 = sphi 0, %s66
      %s86 = sphi 0, %s86
      %s88 = sphi 0, %s86
      %s89 = sphi 0, %s88
      %s103 = sphi 0, %s89
      %s107 = sphi 0, %s107
      %s109 = sphi 0, %s107
      %s110 = sphi 0, %s109
      %s124 = sphi 0, %s110
      %s128 = sphi 0, %s128
      %s130 = sphi 0, %s128
      %s131 = sphi 0, %s130
      %s145 = sphi 0, %s131
      %s149 = sphi 0, %s149
      %s151 = sphi 0, %s149
      %s152 = sphi 0, %s151
      %s166 = sphi 0, %s152
      %s170 = sphi 0, %s170
      %s172 = sphi 0, %s170
      %s173 = sphi 0, %s172
      %s187 = sphi 0, %s173
      %s191 = sphi 0, %s191
      %s193 = sphi 0, %s191
      %s194 = sphi 0, %s193
      %s208 = sphi 0, %s194
      %s212 = sphi 0, %s212
      %s214 = sphi 0, %s212
      %s215 = sphi 0, %s214
      %s229 = sphi 0, %s215
      %s233 = sphi 0, %s233
      %s235 = sphi 0, %s233
      %s236 = sphi 0, %s235
      %s250 = sphi 0, %s236
      %s256 = sphi 0, %s258
      %s259 = sphi 0, %s256
      %s260 = sphi 0, %s259
      %s276 = sphi 0, %s260
    $region4: #{tpu_custom_call.1} parent=1 // loop_header_branch
      %29 = sbr.rel (%p27) target = $region8
    $region5: #{tpu_custom_call.1} parent=1 // loop_body
      %s31 = ssub.s32 %s26, 1
      %s32 = ssub.s32 %s26, 2
      %s33 = sadd.s32 %s26, 1
      %s34 = ssub.s32 %s26, %s33
      %p35 = scmp.eq.s32.totalorder %s34, 0
      %s37 = sadd.s32 %s36, 1
      %s38 = scalar_select %p35, %s36, %s37
      %p41 = pneg %p35
      %p42 = scmp.eq.s32.totalorder %s26, 1
      %p43 = por %p41, %p42
      %p44 = scmp.ne.s32.totalorder %s36, %s39
      %p45 = scmp.eq.s32.totalorder %s26, 0
      %p46 = por %p44, %p45
      %p47 = scmp.ne.s32.totalorder %s36, %s39
      %p48 = scmp.eq.s32.totalorder %s31, 1
      %p49 = por %p47, %p48
      %p50 = scmp.ne.s32.totalorder %s39, %s40
      %p51 = scmp.eq.s32.totalorder %s31, 0
      %p52 = por %p50, %p51
      %p53 = scmp.ne.s32.totalorder %s39, %s40
      %p54 = scmp.eq.s32.totalorder %s32, 1
      %p55 = por %p53, %p54
      %p57 = scmp.ne.s32.totalorder %s40, %s56
      %p58 = scmp.eq.s32.totalorder %s32, 0
      %p59 = por %p57, %p58
      %s60 = ssub.s32 %s26, %s33
      %p61 = scmp.eq.s32.totalorder %s60, 0
      %s63 = sadd.s32 %s62, 1
      %s64 = scalar_select %p61, %s62, %s63
      %p67 = pneg %p61
      %p68 = scmp.eq.s32.totalorder %s26, 1
      %p69 = por %p67, %p68
      %p70 = scmp.ne.s32.totalorder %s62, %s65
      %p71 = scmp.eq.s32.totalorder %s26, 0
      %p72 = por %p70, %p71
      %p73 = scmp.ne.s32.totalorder %s62, %s65
      %p74 = scmp.eq.s32.totalorder %s31, 1
      %p75 = por %p73, %p74
      %p76 = scmp.ne.s32.totalorder %s65, %s66
      %p77 = scmp.eq.s32.totalorder %s31, 0
      %p78 = por %p76, %p77
      %p79 = scmp.ne.s32.totalorder %s65, %s66
      %p80 = scmp.eq.s32.totalorder %s32, 1
      %p81 = por %p79, %p80
      %p83 = scmp.ne.s32.totalorder %s66, %s82
      %p84 = scmp.eq.s32.totalorder %s32, 0
      %p85 = por %p83, %p84
      %s87 = sadd.s32 %s86, 1
      %p90 = scmp.eq.s32.totalorder %s26, 1
      %p91 = scmp.ne.s32.totalorder %s86, %s88
      %p92 = scmp.eq.s32.totalorder %s26, 0
      %p93 = por %p91, %p92
      %p94 = scmp.ne.s32.totalorder %s86, %s88
      %p95 = scmp.eq.s32.totalorder %s31, 1
      %p96 = por %p94, %p95
      %p97 = scmp.ne.s32.totalorder %s88, %s89
      %p98 = scmp.eq.s32.totalorder %s31, 0
      %p99 = por %p97, %p98
      %p100 = scmp.ne.s32.totalorder %s88, %s89
      %p101 = scmp.eq.s32.totalorder %s32, 1
      %p102 = por %p100, %p101
      %p104 = scmp.ne.s32.totalorder %s89, %s103
      %p105 = scmp.eq.s32.totalorder %s32, 0
      %p106 = por %p104, %p105
      %s108 = sadd.s32 %s107, 1
      %p111 = scmp.eq.s32.totalorder %s26, 1
      %p112 = scmp.ne.s32.totalorder %s107, %s109
      %p113 = scmp.eq.s32.totalorder %s26, 0
      %p114 = por %p112, %p113
      %p115 = scmp.ne.s32.totalorder %s107, %s109
      %p116 = scmp.eq.s32.totalorder %s31, 1
      %p117 = por %p115, %p116
      %p118 = scmp.ne.s32.totalorder %s109, %s110
      %p119 = scmp.eq.s32.totalorder %s31, 0
      %p120 = por %p118, %p119
      %p121 = scmp.ne.s32.totalorder %s109, %s110
      %p122 = scmp.eq.s32.totalorder %s32, 1
      %p123 = por %p121, %p122
      %p125 = scmp.ne.s32.totalorder %s110, %s124
      %p126 = scmp.eq.s32.totalorder %s32, 0
      %p127 = por %p125, %p126
      %s129 = sadd.s32 %s128, 1
      %p132 = scmp.eq.s32.totalorder %s26, 1
      %p133 = scmp.ne.s32.totalorder %s128, %s130
      %p134 = scmp.eq.s32.totalorder %s26, 0
      %p135 = por %p133, %p134
      %p136 = scmp.ne.s32.totalorder %s128, %s130
      %p137 = scmp.eq.s32.totalorder %s31, 1
      %p138 = por %p136, %p137
      %p139 = scmp.ne.s32.totalorder %s130, %s131
      %p140 = scmp.eq.s32.totalorder %s31, 0
      %p141 = por %p139, %p140
      %p142 = scmp.ne.s32.totalorder %s130, %s131
      %p143 = scmp.eq.s32.totalorder %s32, 1
      %p144 = por %p142, %p143
      %p146 = scmp.ne.s32.totalorder %s131, %s145
      %p147 = scmp.eq.s32.totalorder %s32, 0
      %p148 = por %p146, %p147
      %s150 = sadd.s32 %s149, 1
      %p153 = scmp.eq.s32.totalorder %s26, 1
      %p154 = scmp.ne.s32.totalorder %s149, %s151
      %p155 = scmp.eq.s32.totalorder %s26, 0
      %p156 = por %p154, %p155
      %p157 = scmp.ne.s32.totalorder %s149, %s151
      %p158 = scmp.eq.s32.totalorder %s31, 1
      %p159 = por %p157, %p158
      %p160 = scmp.ne.s32.totalorder %s151, %s152
      %p161 = scmp.eq.s32.totalorder %s31, 0
      %p162 = por %p160, %p161
      %p163 = scmp.ne.s32.totalorder %s151, %s152
      %p164 = scmp.eq.s32.totalorder %s32, 1
      %p165 = por %p163, %p164
      %p167 = scmp.ne.s32.totalorder %s152, %s166
      %p168 = scmp.eq.s32.totalorder %s32, 0
      %p169 = por %p167, %p168
      %s171 = sadd.s32 %s170, 1
      %p174 = scmp.eq.s32.totalorder %s26, 1
      %p175 = scmp.ne.s32.totalorder %s170, %s172
      %p176 = scmp.eq.s32.totalorder %s26, 0
      %p177 = por %p175, %p176
      %p178 = scmp.ne.s32.totalorder %s170, %s172
      %p179 = scmp.eq.s32.totalorder %s31, 1
      %p180 = por %p178, %p179
      %p181 = scmp.ne.s32.totalorder %s172, %s173
      %p182 = scmp.eq.s32.totalorder %s31, 0
      %p183 = por %p181, %p182
      %p184 = scmp.ne.s32.totalorder %s172, %s173
      %p185 = scmp.eq.s32.totalorder %s32, 1
      %p186 = por %p184, %p185
      %p188 = scmp.ne.s32.totalorder %s173, %s187
      %p189 = scmp.eq.s32.totalorder %s32, 0
      %p190 = por %p188, %p189
      %s192 = sadd.s32 %s191, 1
      %p195 = scmp.eq.s32.totalorder %s26, 1
      %p196 = scmp.ne.s32.totalorder %s191, %s193
      %p197 = scmp.eq.s32.totalorder %s26, 0
      %p198 = por %p196, %p197
      %p199 = scmp.ne.s32.totalorder %s191, %s193
      %p200 = scmp.eq.s32.totalorder %s31, 1
      %p201 = por %p199, %p200
      %p202 = scmp.ne.s32.totalorder %s193, %s194
      %p203 = scmp.eq.s32.totalorder %s31, 0
      %p204 = por %p202, %p203
      %p205 = scmp.ne.s32.totalorder %s193, %s194
      %p206 = scmp.eq.s32.totalorder %s32, 1
      %p207 = por %p205, %p206
      %p209 = scmp.ne.s32.totalorder %s194, %s208
      %p210 = scmp.eq.s32.totalorder %s32, 0
      %p211 = por %p209, %p210
      %s213 = sadd.s32 %s212, 1
      %p216 = scmp.eq.s32.totalorder %s26, 1
      %p217 = scmp.ne.s32.totalorder %s212, %s214
      %p218 = scmp.eq.s32.totalorder %s26, 0
      %p219 = por %p217, %p218
      %p220 = scmp.ne.s32.totalorder %s212, %s214
      %p221 = scmp.eq.s32.totalorder %s31, 1
      %p222 = por %p220, %p221
      %p223 = scmp.ne.s32.totalorder %s214, %s215
      %p224 = scmp.eq.s32.totalorder %s31, 0
      %p225 = por %p223, %p224
      %p226 = scmp.ne.s32.totalorder %s214, %s215
      %p227 = scmp.eq.s32.totalorder %s32, 1
      %p228 = por %p226, %p227
      %p230 = scmp.ne.s32.totalorder %s215, %s229
      %p231 = scmp.eq.s32.totalorder %s32, 0
      %p232 = por %p230, %p231
      %s234 = sadd.s32 %s233, 1
      %p237 = scmp.eq.s32.totalorder %s26, 1
      %p238 = scmp.ne.s32.totalorder %s233, %s235
      %p239 = scmp.eq.s32.totalorder %s26, 0
      %p240 = por %p238, %p239
      %p241 = scmp.ne.s32.totalorder %s233, %s235
      %p242 = scmp.eq.s32.totalorder %s31, 1
      %p243 = por %p241, %p242
      %p244 = scmp.ne.s32.totalorder %s235, %s236
      %p245 = scmp.eq.s32.totalorder %s31, 0
      %p246 = por %p244, %p245
      %p247 = scmp.ne.s32.totalorder %s235, %s236
      %p248 = scmp.eq.s32.totalorder %s32, 1
      %p249 = por %p247, %p248
      %p251 = scmp.ne.s32.totalorder %s236, %s250
      %p252 = scmp.eq.s32.totalorder %s32, 0
      %p253 = por %p251, %p252
      %s254 = ssub.s32 %s26, %s33
      %p255 = scmp.eq.s32.totalorder %s254, 0
      %s257 = sadd.s32 %s256, 1
      %s258 = scalar_select %p255, %s256, %s257
      %p261 = pneg %p255
      %p262 = scmp.eq.s32.totalorder %s26, 1
      %p263 = por %p261, %p262
      %p264 = scmp.ne.s32.totalorder %s256, %s259
      %p265 = scmp.eq.s32.totalorder %s26, 0
      %p266 = por %p264, %p265
      %p267 = scmp.ne.s32.totalorder %s256, %s259
      %p268 = scmp.eq.s32.totalorder %s31, 1
      %p269 = por %p267, %p268
      %p270 = scmp.ne.s32.totalorder %s259, %s260
      %p271 = scmp.eq.s32.totalorder %s31, 0
      %p272 = por %p270, %p271
      %p273 = scmp.ne.s32.totalorder %s259, %s260
      %p274 = scmp.eq.s32.totalorder %s32, 1
      %p275 = por %p273, %p274
      %p277 = scmp.ne.s32.totalorder %s260, %s276
      %p278 = scmp.eq.s32.totalorder %s32, 0
      %p279 = por %p277, %p278
      %p280 = scmp.le.s32.totalorder 1, %s26
      %p281 = scmp.lt.s32.totalorder %s26, 3
      %p282 = pnand %p280, %p281
      %p283 = pneg %p282
      // Predicated region
      $region9: #{tpu_custom_call.1} parent=5 // pred_check
        _
      $region10: #{tpu_custom_call.1} parent=5 // pred_check_branch
        %285 = sbr.rel (%p282) target = $region12
      $region11: #{tpu_custom_call.1} parent=5 // pred_region
        %s286 = ssub.s32 %s26, 1
        // Predicated region
        $region13: #{tpu_custom_call.1} parent=11 // pred_check
          %p287 = pneg %p99
        $region14: #{tpu_custom_call.1} parent=11 // pred_check_branch
          %289 = sbr.rel (%p287) target = $region16
        $region15: #{tpu_custom_call.1} parent=11 // pred_region
          %s291 = ssub.s32 512, 512
          %292 = vsyncadd [#allocation6], %s291
          %s293 = sshll.u32 [#allocation7], 4
          %s294 = int_to_ptr.vmem [resolvable:$true] %s293
          %299 = dma.hbm_to_vmem [thread:$0]  %s2, 512, %s294, [#allocation6], 128, 128, 8
        $region16: #{tpu_custom_call.1} parent=11 // pred_fallthru
          _
        // Predicated region
        $region17: #{tpu_custom_call.1} parent=11 // pred_check
          %p300 = pneg %p120
        $region18: #{tpu_custom_call.1} parent=11 // pred_check_branch
          %302 = sbr.rel (%p300) target = $region20
        $region19: #{tpu_custom_call.1} parent=11 // pred_region
          _
        $region20: #{tpu_custom_call.1} parent=11 // pred_fallthru
          _
        // Predicated region
        $region21: #{tpu_custom_call.1} parent=11 // pred_check
          %p303 = pneg %p141
        $region22: #{tpu_custom_call.1} parent=11 // pred_check_branch
          %305 = sbr.rel (%p303) target = $region24
        $region23: #{tpu_custom_call.1} parent=11 // pred_region
          %s307 = ssub.s32 512, 512
          %308 = vsyncadd [#allocation9], %s307
          %s309 = sshll.u32 [#allocation8], 4
          %s310 = int_to_ptr.vmem [resolvable:$true] %s309
          %315 = dma.hbm_to_vmem [thread:$0]  %s4, 512, %s310, [#allocation9], 128, 128, 8
        $region24: #{tpu_custom_call.1} parent=11 // pred_fallthru
          _
        // Predicated region
        $region25: #{tpu_custom_call.1} parent=11 // pred_check
          %p316 = pneg %p162
        $region26: #{tpu_custom_call.1} parent=11 // pred_check_branch
          %318 = sbr.rel (%p316) target = $region28
        $region27: #{tpu_custom_call.1} parent=11 // pred_region
          _
        $region28: #{tpu_custom_call.1} parent=11 // pred_fallthru
          _
        // Predicated region
        $region29: #{tpu_custom_call.1} parent=11 // pred_check
          %p319 = pneg %p183
        $region30: #{tpu_custom_call.1} parent=11 // pred_check_branch
          %321 = sbr.rel (%p319) target = $region32
        $region31: #{tpu_custom_call.1} parent=11 // pred_region
          %s323 = ssub.s32 512, 512
          %324 = vsyncadd [#allocation9], %s323
          %s325 = sshll.u32 [#allocation10], 4
          %s326 = int_to_ptr.vmem [resolvable:$true] %s325
          %331 = dma.hbm_to_vmem [thread:$0]  %s6, 512, %s326, [#allocation9], 128, 128, 8
        $region32: #{tpu_custom_call.1} parent=11 // pred_fallthru
          _
        // Predicated region
        $region33: #{tpu_custom_call.1} parent=11 // pred_check
          %p332 = pneg %p204
        $region34: #{tpu_custom_call.1} parent=11 // pred_check_branch
          %334 = sbr.rel (%p332) target = $region36
        $region35: #{tpu_custom_call.1} parent=11 // pred_region
          _
        $region36: #{tpu_custom_call.1} parent=11 // pred_fallthru
          _
        // Predicated region
        $region37: #{tpu_custom_call.1} parent=11 // pred_check
          %p335 = pneg %p225
        $region38: #{tpu_custom_call.1} parent=11 // pred_check_branch
          %337 = sbr.rel (%p335) target = $region40
        $region39: #{tpu_custom_call.1} parent=11 // pred_region
          _
        $region40: #{tpu_custom_call.1} parent=11 // pred_fallthru
          _
        // Predicated region
        $region41: #{tpu_custom_call.1} parent=11 // pred_check
          %p338 = pneg %p246
        $region42: #{tpu_custom_call.1} parent=11 // pred_check_branch
          %340 = sbr.rel (%p338) target = $region44
        $region43: #{tpu_custom_call.1} parent=11 // pred_region
          _
        $region44: #{tpu_custom_call.1} parent=11 // pred_fallthru
          _
      $region12: #{tpu_custom_call.1} parent=5 // pred_fallthru
        _
      %p341 = scmp.lt.s32.totalorder %s26, 2
      // Predicated region
      $region45: #{tpu_custom_call.1} parent=5 // pred_check
        %p342 = pneg %p341
      $region46: #{tpu_custom_call.1} parent=5 // pred_check_branch
        %344 = sbr.rel (%p342) target = $region48
      $region47: #{tpu_custom_call.1} parent=5 // pred_region
        // Predicated region
        $region49: #{tpu_custom_call.1} parent=47 // pred_check
          %p345 = pneg %p46
        $region50: #{tpu_custom_call.1} parent=47 // pred_check_branch
          %347 = sbr.rel (%p345) target = $region52
        $region51: #{tpu_custom_call.1} parent=47 // pred_region
          %s348 = sand.u32 %s36, 1
          %s349 = scalar_lea.sflag [#allocation3], %s348
          %s350 = sand.u32 %s36, 1
          %s351 = smul.addr %s350, 8
          %s352 = scalar_lea.vmem [#allocation2], %s351
          %s354 = ssub.s32 128, 128
          %355 = vsyncadd %s349, %s354
          %s356 = smul.addr %s26, 128
          %s357 = scalar_lea.hbm %s0, %s356
          %s359 = sshll.u32 %s352, 4
          %s360 = int_to_ptr.vmem [resolvable:$true] %s359
          %362 = dma.hbm_to_vmem [thread:$0]  %s357, 128, %s360, %s349
        $region52: #{tpu_custom_call.1} parent=47 // pred_fallthru
          _
        // Predicated region
        $region53: #{tpu_custom_call.1} parent=47 // pred_check
          %p363 = pneg %p72
        $region54: #{tpu_custom_call.1} parent=47 // pred_check_branch
          %365 = sbr.rel (%p363) target = $region56
        $region55: #{tpu_custom_call.1} parent=47 // pred_region
          %s366 = sand.u32 %s26, 1
          %s367 = scalar_lea.sflag [#allocation6], %s366
          %s368 = sand.u32 %s62, 1
          %s369 = smul.addr %s368, 8
          %s370 = scalar_lea.vmem [#allocation5], %s369
          %s372 = ssub.s32 128, 128
          %373 = vsyncadd %s367, %s372
          %s374 = smul.addr %s26, 128
          %s375 = scalar_lea.hbm %s1, %s374
          %s377 = sshll.u32 %s370, 4
          %s378 = int_to_ptr.vmem [resolvable:$true] %s377
          %380 = dma.hbm_to_vmem [thread:$0]  %s375, 128, %s378, %s367
        $region56: #{tpu_custom_call.1} parent=47 // pred_fallthru
          _
      $region48: #{tpu_custom_call.1} parent=5 // pred_fallthru
        _
      %p381 = scmp.le.s32.totalorder 1, %s26
      %p382 = scmp.lt.s32.totalorder %s26, 3
      %p383 = pnand %p381, %p382
      %p384 = pneg %p383
      // Predicated region
      $region57: #{tpu_custom_call.1} parent=5 // pred_check
        _
      $region58: #{tpu_custom_call.1} parent=5 // pred_check_branch
        %386 = sbr.rel (%p383) target = $region60
      $region59: #{tpu_custom_call.1} parent=5 // pred_region
        %s387 = ssub.s32 %s26, 1
        %s388 = sand.u32 %s39, 1
        %s389 = scalar_lea.sflag [#allocation3], %s388
        %s390 = sand.u32 %s39, 1
        %s391 = smul.addr %s390, 8
        %s392 = scalar_lea.vmem [#allocation2], %s391
        // Predicated region
        $region61: #{tpu_custom_call.1} parent=59 // pred_check
          %p393 = pneg %p52
        $region62: #{tpu_custom_call.1} parent=59 // pred_check_branch
          %395 = sbr.rel (%p393) target = $region64
        $region63: #{tpu_custom_call.1} parent=59 // pred_region
          %396 = dma.done %s389, 128
        $region64: #{tpu_custom_call.1} parent=59 // pred_fallthru
          _
        %s397 = sand.u32 %s31, 1
        %s398 = scalar_lea.sflag [#allocation6], %s397
        %s399 = sand.u32 %s65, 1
        %s400 = smul.addr %s399, 8
        %s401 = scalar_lea.vmem [#allocation5], %s400
        // Predicated region
        $region65: #{tpu_custom_call.1} parent=59 // pred_check
          %p402 = pneg %p78
        $region66: #{tpu_custom_call.1} parent=59 // pred_check_branch
          %404 = sbr.rel (%p402) target = $region68
        $region67: #{tpu_custom_call.1} parent=59 // pred_region
          %405 = dma.done %s398, 128
        $region68: #{tpu_custom_call.1} parent=59 // pred_fallthru
          _
        // Predicated region
        $region69: #{tpu_custom_call.1} parent=59 // pred_check
          %p406 = pneg %p99
        $region70: #{tpu_custom_call.1} parent=59 // pred_check_branch
          %408 = sbr.rel (%p406) target = $region72
        $region71: #{tpu_custom_call.1} parent=59 // pred_region
          %409 = dma.done [#allocation6], 512
        $region72: #{tpu_custom_call.1} parent=59 // pred_fallthru
          _
        // Predicated region
        $region73: #{tpu_custom_call.1} parent=59 // pred_check
          %p410 = pneg %p141
        $region74: #{tpu_custom_call.1} parent=59 // pred_check_branch
          %412 = sbr.rel (%p410) target = $region76
        $region75: #{tpu_custom_call.1} parent=59 // pred_region
          %413 = dma.done [#allocation9], 512
        $region76: #{tpu_custom_call.1} parent=59 // pred_fallthru
          _
        // Predicated region
        $region77: #{tpu_custom_call.1} parent=59 // pred_check
          %p414 = pneg %p183
        $region78: #{tpu_custom_call.1} parent=59 // pred_check_branch
          %416 = sbr.rel (%p414) target = $region80
        $region79: #{tpu_custom_call.1} parent=59 // pred_region
          %417 = dma.done [#allocation9], 512
        $region80: #{tpu_custom_call.1} parent=59 // pred_fallthru
          _
        %s418 = sand.u32 %s39, 1
        %s419 = scalar_lea.sflag [#allocation3], %s418
        %s420 = sand.u32 %s39, 1
        %s421 = smul.addr %s420, 8
        %s422 = scalar_lea.vmem [#allocation2], %s421
        %p423 = pneg %p52
        %p424 = pneg %p49
        %s425 = sand.u32 %s31, 1
        %s426 = scalar_lea.sflag [#allocation6], %s425
        %s427 = sand.u32 %s65, 1
        %s428 = smul.addr %s427, 8
        %s429 = scalar_lea.vmem [#allocation5], %s428
        %p430 = pneg %p78
        %p431 = pneg %p75
        %p432 = pneg %p99
        %p433 = pneg %p96
        %p434 = pneg %p120
        %p435 = pneg %p117
        %p436 = pneg %p141
        %p437 = pneg %p138
        %p438 = pneg %p162
        %p439 = pneg %p159
        %p440 = pneg %p183
        %p441 = pneg %p180
        %p442 = pneg %p204
        %p443 = pneg %p201
        %p444 = pneg %p225
        %p445 = pneg %p222
        %p446 = pneg %p246
        %p447 = pneg %p243
        %p448 = pneg %p272
        %p449 = pneg %p269
        %s450 = sand.u32 %s259, 1
        %s451 = scalar_lea.sflag [#allocation4], %s450
        %s452 = sand.u32 %s259, 1
        %s453 = smul.addr %s452, 8
        %s454 = scalar_lea.vmem [#allocation11], %s453
        %v456 = vld [vmem:[%s392] sm:$0xff]
        %v457 = vld [vmem:[%s401] sm:$0xff]
        %v458 = vadd.f32 %v456, %v457
        %v459 = vpack.c.bf16 %v458, %v458
        %v460 = vld [vmem:[#allocation7] sm:$0xff]
        %v461 = vld [vmem:[#allocation7 + $0x8] sm:$0xff]
        %v462 = vld [vmem:[#allocation7 + $0x10] sm:$0xff]
        %v463 = vld [vmem:[#allocation7 + $0x18] sm:$0xff]
        %v464 = vpack.c.bf16 %v461, %v460
        %v465 = vpack.c.bf16 %v463, %v462
        %v466 = vld [vmem:[%s3] sm:$0x1]
        %v468 = vlaneseq
        %v469 = vshrl.u32 %v468, 7
        %v470 = vsub.s32 0, %v469
        %v471 = vrot.slane %v466, %v470
        %vm473 = vcmask 261120
        %v475 = vsel %vm473, %v459, 0
        %477 = vmatprep.subr.bf16.mxu0 0
        %478 = vmatpush1.bf16.msra.mxu0 %v464
        %479 = vmatprep.subr.bf16.mxu0 0
        %480 = vmatpush1.bf16.msra.mxu0 %v465
        %481 = vmatprep.subr.bf16.mxu0 0
        %482 = vmatpush1.bf16.msra.mxu0 0
        %483 = vmatprep.subr.bf16.mxu0 0
        %484 = vmatpush1.bf16.msra.mxu0 0
        %485 = vmatprep.subr.bf16.mxu0 0
        %486 = vmatpush1.bf16.msra.mxu0 0
        %487 = vmatprep.subr.bf16.mxu0 0
        %488 = vmatpush1.bf16.msra.mxu0 0
        %489 = vmatprep.subr.bf16.mxu0 0
        %490 = vmatpush1.bf16.msra.mxu0 0
        %491 = vmatprep.subr.bf16.mxu0 0
        %492 = vmatpush1.bf16.msra.mxu0 0
        %493 = vmatprep.subr.bf16.mxu0 0
        %494 = vmatpush1.bf16.msra.mxu0 0
        %495 = vmatprep.subr.bf16.mxu0 0
        %496 = vmatpush1.bf16.msra.mxu0 0
        %497 = vmatprep.subr.bf16.mxu0 0
        %498 = vmatpush1.bf16.msra.mxu0 0
        %499 = vmatprep.subr.bf16.mxu0 0
        %500 = vmatpush1.bf16.msra.mxu0 0
        %501 = vmatprep.subr.bf16.mxu0 0
        %502 = vmatpush1.bf16.msra.mxu0 0
        %503 = vmatprep.subr.bf16.mxu0 0
        %504 = vmatpush1.bf16.msra.mxu0 0
        %505 = vmatprep.subr.bf16.mxu0 0
        %506 = vmatpush1.bf16.msra.mxu0 0
        %507 = vmatprep.subr.bf16.mxu0 0
        %508 = vmatpush1.bf16.msra.mxu0 0
        %509 = vmatprep.mubr.bf16.mxu0 0
        %510 = vmatmul.mubr.bf16.gmra.mrb[0].mxu0 %v475
        %v511 = vpop.f32.mrb[0].mxu0
        %v512 = vadd.f32 %v471, %v511
        %v513 = vpop.f32.mrb[0].mxu0
        %v514 = vpop.f32.mrb[0].mxu0
        %v515 = vpop.f32.mrb[0].mxu0
        %516 = vdwg.mxu0
        %v517 = vpack.c.bf16 %v456, %v456
        %v518 = vld [vmem:[#allocation8] sm:$0xff]
        %v519 = vld [vmem:[#allocation8 + $0x8] sm:$0xff]
        %v520 = vld [vmem:[#allocation8 + $0x10] sm:$0xff]
        %v521 = vld [vmem:[#allocation8 + $0x18] sm:$0xff]
        %v522 = vpack.c.bf16 %v519, %v518
        %v523 = vpack.c.bf16 %v521, %v520
        %v524 = vld [vmem:[%s5] sm:$0x1]
        %v526 = vlaneseq
        %v527 = vshrl.u32 %v526, 7
        %v528 = vsub.s32 0, %v527
        %v529 = vrot.slane %v524, %v528
        %v532 = vsel %vm473, %v517, 0
        %534 = vmatprep.subr.bf16.mxu0 0
        %535 = vmatpush1.bf16.msra.mxu0 %v522
        %536 = vmatprep.subr.bf16.mxu0 0
        %537 = vmatpush1.bf16.msra.mxu0 %v523
        %538 = vmatprep.subr.bf16.mxu0 0
        %539 = vmatpush1.bf16.msra.mxu0 0
        %540 = vmatprep.subr.bf16.mxu0 0
        %541 = vmatpush1.bf16.msra.mxu0 0
        %542 = vmatprep.subr.bf16.mxu0 0
        %543 = vmatpush1.bf16.msra.mxu0 0
        %544 = vmatprep.subr.bf16.mxu0 0
        %545 = vmatpush1.bf16.msra.mxu0 0
        %546 = vmatprep.subr.bf16.mxu0 0
        %547 = vmatpush1.bf16.msra.mxu0 0
        %548 = vmatprep.subr.bf16.mxu0 0
        %549 = vmatpush1.bf16.msra.mxu0 0
        %550 = vmatprep.subr.bf16.mxu0 0
        %551 = vmatpush1.bf16.msra.mxu0 0
        %552 = vmatprep.subr.bf16.mxu0 0
        %553 = vmatpush1.bf16.msra.mxu0 0
        %554 = vmatprep.subr.bf16.mxu0 0
        %555 = vmatpush1.bf16.msra.mxu0 0
        %556 = vmatprep.subr.bf16.mxu0 0
        %557 = vmatpush1.bf16.msra.mxu0 0
        %558 = vmatprep.subr.bf16.mxu0 0
        %559 = vmatpush1.bf16.msra.mxu0 0
        %560 = vmatprep.subr.bf16.mxu0 0
        %561 = vmatpush1.bf16.msra.mxu0 0
        %562 = vmatprep.subr.bf16.mxu0 0
        %563 = vmatpush1.bf16.msra.mxu0 0
        %564 = vmatprep.subr.bf16.mxu0 0
        %565 = vmatpush1.bf16.msra.mxu0 0
        %566 = vmatprep.mubr.bf16.mxu0 0
        %567 = vmatmul.mubr.bf16.gmra.mrb[0].mxu0 %v532
        %v568 = vpop.f32.mrb[0].mxu0
        %v569 = vadd.f32 %v529, %v568
        %v570 = vpop.f32.mrb[0].mxu0
        %v571 = vpop.f32.mrb[0].mxu0
        %v572 = vpop.f32.mrb[0].mxu0
        %573 = vdwg.mxu0
        %v574 = vpack.c.bf16 %v512, %v512
        %v575 = vpack.c.bf16 %v569, %v569
        %577 = vrot.lane.b32.xlu0 %v574, 96
        %v578 = vpop.permute.xlu0 %577
        %vm579 = vcmask 64512
        %v581 = vsel %vm579, %v574, 0
        %v584 = vsel %vm579, %v578, 0
        %586 = vmatprep.subr.bf16.mxu0 0
        %587 = vmatpush1.bf16.xpose.msra.mxu0 %v584
        %588 = vmatprep.subr.bf16.mxu0 0
        %589 = vmatpush1.bf16.xpose.msra.mxu0 0
        %590 = vmatprep.subr.bf16.mxu0 0
        %591 = vmatpush1.bf16.xpose.msra.mxu0 0
        %592 = vmatprep.subr.bf16.mxu0 0
        %593 = vmatpush1.bf16.xpose.msra.mxu0 0
        %594 = vmatprep.subr.bf16.mxu0 0
        %595 = vmatpush1.bf16.xpose.msra.mxu0 0
        %596 = vmatprep.subr.bf16.mxu0 0
        %597 = vmatpush1.bf16.xpose.msra.mxu0 0
        %598 = vmatprep.subr.bf16.mxu0 0
        %599 = vmatpush1.bf16.xpose.msra.mxu0 0
        %600 = vmatprep.subr.bf16.mxu0 0
        %601 = vmatpush1.bf16.xpose.msra.mxu0 0
        %602 = vmatprep.subr.bf16.mxu0 0
        %603 = vmatpush1.bf16.xpose.msra.mxu0 0
        %604 = vmatprep.subr.bf16.mxu0 0
        %605 = vmatpush1.bf16.xpose.msra.mxu0 0
        %606 = vmatprep.subr.bf16.mxu0 0
        %607 = vmatpush1.bf16.xpose.msra.mxu0 0
        %608 = vmatprep.subr.bf16.mxu0 0
        %609 = vmatpush1.bf16.xpose.msra.mxu0 0
        %610 = vmatprep.subr.bf16.mxu0 0
        %611 = vmatpush1.bf16.xpose.msra.mxu0 0
        %612 = vmatprep.subr.bf16.mxu0 0
        %613 = vmatpush1.bf16.xpose.msra.mxu0 0
        %614 = vmatprep.subr.bf16.mxu0 0
        %615 = vmatpush1.bf16.xpose.msra.mxu0 0
        %616 = vmatprep.subr.bf16.mxu0 0
        %617 = vmatpush1.bf16.xpose.msra.mxu0 0
        %618 = vmatprep.mubr.bf16.mxu0 0
        %619 = vmatmul.mubr.bf16.gmra.mrb[0].mxu0 %v581
        %v620 = vpop.f32.mrb[0].mxu0
        %v621 = vadd.f32 0.0, %v620
        %v622 = vpop.f32.mrb[0].mxu0
        %v623 = vpop.f32.mrb[0].mxu0
        %v624 = vpop.f32.mrb[0].mxu0
        %625 = vdwg.mxu0
        %v626 = vmul.f32 %v621, 0.35355338
        %v627 = vsel %vm579, %v626, -inf
        %628 = vmax.xlane.f32.xlu0 %v627
        %v629 = vpop.xlane.xlu0 %628
        %v630 = vsub.f32 %v626, %v629
        %v631 = vmul.f32 %v630, 1.442695
        %v632 = vpow.pop %v631
        %v633 = vsel %vm579, %v632, 0.0
        %634 = vadd.xlane.f32.xlu0 %v633
        %v635 = vpop.xlane.xlu0 %634
        %v636 = vrcp.pop %v635
        %v637 = vmul.f32 %v632, %v636
        %v638 = vpack.c.bf16 %v637, %v637
        %v640 = vsel %vm579, %v638, 0
        %vm642 = vcmask 1043456
        %v644 = vsel %vm642, %v575, 0
        %646 = vmatprep.subr.bf16.mxu0 0
        %647 = vmatpush1.bf16.msra.mxu0 %v644
        %648 = vmatprep.subr.bf16.mxu0 0
        %649 = vmatpush1.bf16.msra.mxu0 0
        %650 = vmatprep.subr.bf16.mxu0 0
        %651 = vmatpush1.bf16.msra.mxu0 0
        %652 = vmatprep.subr.bf16.mxu0 0
        %653 = vmatpush1.bf16.msra.mxu0 0
        %654 = vmatprep.subr.bf16.mxu0 0
        %655 = vmatpush1.bf16.msra.mxu0 0
        %656 = vmatprep.subr.bf16.mxu0 0
        %657 = vmatpush1.bf16.msra.mxu0 0
        %658 = vmatprep.subr.bf16.mxu0 0
        %659 = vmatpush1.bf16.msra.mxu0 0
        %660 = vmatprep.subr.bf16.mxu0 0
        %661 = vmatpush1.bf16.msra.mxu0 0
        %662 = vmatprep.subr.bf16.mxu0 0
        %663 = vmatpush1.bf16.msra.mxu0 0
        %664 = vmatprep.subr.bf16.mxu0 0
        %665 = vmatpush1.bf16.msra.mxu0 0
        %666 = vmatprep.subr.bf16.mxu0 0
        %667 = vmatpush1.bf16.msra.mxu0 0
        %668 = vmatprep.subr.bf16.mxu0 0
        %669 = vmatpush1.bf16.msra.mxu0 0
        %670 = vmatprep.subr.bf16.mxu0 0
        %671 = vmatpush1.bf16.msra.mxu0 0
        %672 = vmatprep.subr.bf16.mxu0 0
        %673 = vmatpush1.bf16.msra.mxu0 0
        %674 = vmatprep.subr.bf16.mxu0 0
        %675 = vmatpush1.bf16.msra.mxu0 0
        %676 = vmatprep.subr.bf16.mxu0 0
        %677 = vmatpush1.bf16.msra.mxu0 0
        %678 = vmatprep.mubr.bf16.mxu0 0
        %679 = vmatmul.mubr.bf16.gmra.mrb[0].mxu0 %v640
        %v680 = vpop.f32.mrb[0].mxu0
        %v681 = vadd.f32 0.0, %v680
        %v682 = vpop.f32.mrb[0].mxu0
        %v683 = vpop.f32.mrb[0].mxu0
        %v684 = vpop.f32.mrb[0].mxu0
        %685 = vdwg.mxu0
        %686 = vrot.lane.b32.xlu0 %v574, 120
        %v687 = vpop.permute.xlu0 %686
        %688 = vrot.lane.b32.xlu0 %v574, 88
        %v689 = vpop.permute.xlu0 %688
        %v691 = vsel %vm579, %v687, 0
        %v694 = vsel %vm579, %v689, 0
        %696 = vmatprep.subr.bf16.mxu0 0
        %697 = vmatpush1.bf16.xpose.msra.mxu0 %v694
        %698 = vmatprep.subr.bf16.mxu0 0
        %699 = vmatpush1.bf16.xpose.msra.mxu0 0
        %700 = vmatprep.subr.bf16.mxu0 0
        %701 = vmatpush1.bf16.xpose.msra.mxu0 0
        %702 = vmatprep.subr.bf16.mxu0 0
        %703 = vmatpush1.bf16.xpose.msra.mxu0 0
        %704 = vmatprep.subr.bf16.mxu0 0
        %705 = vmatpush1.bf16.xpose.msra.mxu0 0
        %706 = vmatprep.subr.bf16.mxu0 0
        %707 = vmatpush1.bf16.xpose.msra.mxu0 0
        %708 = vmatprep.subr.bf16.mxu0 0
        %709 = vmatpush1.bf16.xpose.msra.mxu0 0
        %710 = vmatprep.subr.bf16.mxu0 0
        %711 = vmatpush1.bf16.xpose.msra.mxu0 0
        %712 = vmatprep.subr.bf16.mxu0 0
        %713 = vmatpush1.bf16.xpose.msra.mxu0 0
        %714 = vmatprep.subr.bf16.mxu0 0
        %715 = vmatpush1.bf16.xpose.msra.mxu0 0
        %716 = vmatprep.subr.bf16.mxu0 0
        %717 = vmatpush1.bf16.xpose.msra.mxu0 0
        %718 = vmatprep.subr.bf16.mxu0 0
        %719 = vmatpush1.bf16.xpose.msra.mxu0 0
        %720 = vmatprep.subr.bf16.mxu0 0
        %721 = vmatpush1.bf16.xpose.msra.mxu0 0
        %722 = vmatprep.subr.bf16.mxu0 0
        %723 = vmatpush1.bf16.xpose.msra.mxu0 0
        %724 = vmatprep.subr.bf16.mxu0 0
        %725 = vmatpush1.bf16.xpose.msra.mxu0 0
        %726 = vmatprep.subr.bf16.mxu0 0
        %727 = vmatpush1.bf16.xpose.msra.mxu0 0
        %728 = vmatprep.mubr.bf16.mxu0 0
        %729 = vmatmul.mubr.bf16.gmra.mrb[0].mxu0 %v691
        %v730 = vpop.f32.mrb[0].mxu0
        %v731 = vadd.f32 0.0, %v730
        %v732 = vpop.f32.mrb[0].mxu0
        %v733 = vpop.f32.mrb[0].mxu0
        %v734 = vpop.f32.mrb[0].mxu0
        %735 = vdwg.mxu0
        %v736 = vmul.f32 %v731, 0.35355338
        %v737 = vsel %vm579, %v736, -inf
        %738 = vmax.xlane.f32.xlu0 %v737
        %v739 = vpop.xlane.xlu0 %738
        %v740 = vsub.f32 %v736, %v739
        %v741 = vmul.f32 %v740, 1.442695
        %v742 = vpow.pop %v741
        %v743 = vsel %vm579, %v742, 0.0
        %744 = vadd.xlane.f32.xlu0 %v743
        %v745 = vpop.xlane.xlu0 %744
        %v746 = vrcp.pop %v745
        %v747 = vmul.f32 %v742, %v746
        %v748 = vpack.c.bf16 %v747, %v747
        %750 = vrot.lane.b32.xlu0 %v575, 120
        %v751 = vpop.permute.xlu0 %750
        %v753 = vsel %vm579, %v748, 0
        %v756 = vsel %vm642, %v751, 0
        %758 = vmatprep.subr.bf16.mxu0 0
        %759 = vmatpush1.bf16.msra.mxu0 %v756
        %760 = vmatprep.subr.bf16.mxu0 0
        %761 = vmatpush1.bf16.msra.mxu0 0
        %762 = vmatprep.subr.bf16.mxu0 0
        %763 = vmatpush1.bf16.msra.mxu0 0
        %764 = vmatprep.subr.bf16.mxu0 0
        %765 = vmatpush1.bf16.msra.mxu0 0
        %766 = vmatprep.subr.bf16.mxu0 0
        %767 = vmatpush1.bf16.msra.mxu0 0
        %768 = vmatprep.subr.bf16.mxu0 0
        %769 = vmatpush1.bf16.msra.mxu0 0
        %770 = vmatprep.subr.bf16.mxu0 0
        %771 = vmatpush1.bf16.msra.mxu0 0
        %772 = vmatprep.subr.bf16.mxu0 0
        %773 = vmatpush1.bf16.msra.mxu0 0
        %774 = vmatprep.subr.bf16.mxu0 0
        %775 = vmatpush1.bf16.msra.mxu0 0
        %776 = vmatprep.subr.bf16.mxu0 0
        %777 = vmatpush1.bf16.msra.mxu0 0
        %778 = vmatprep.subr.bf16.mxu0 0
        %779 = vmatpush1.bf16.msra.mxu0 0
        %780 = vmatprep.subr.bf16.mxu0 0
        %781 = vmatpush1.bf16.msra.mxu0 0
        %782 = vmatprep.subr.bf16.mxu0 0
        %783 = vmatpush1.bf16.msra.mxu0 0
        %784 = vmatprep.subr.bf16.mxu0 0
        %785 = vmatpush1.bf16.msra.mxu0 0
        %786 = vmatprep.subr.bf16.mxu0 0
        %787 = vmatpush1.bf16.msra.mxu0 0
        %788 = vmatprep.subr.bf16.mxu0 0
        %789 = vmatpush1.bf16.msra.mxu0 0
        %790 = vmatprep.mubr.bf16.mxu0 0
        %791 = vmatmul.mubr.bf16.gmra.mrb[0].mxu0 %v753
        %v792 = vpop.f32.mrb[0].mxu0
        %v793 = vadd.f32 0.0, %v792
        %v794 = vpop.f32.mrb[0].mxu0
        %v795 = vpop.f32.mrb[0].mxu0
        %v796 = vpop.f32.mrb[0].mxu0
        %797 = vdwg.mxu0
        %798 = vrot.lane.b32.xlu0 %v574, 112
        %v799 = vpop.permute.xlu0 %798
        %800 = vrot.lane.b32.xlu0 %v574, 80
        %v801 = vpop.permute.xlu0 %800
        %v803 = vsel %vm579, %v799, 0
        %v806 = vsel %vm579, %v801, 0
        %808 = vmatprep.subr.bf16.mxu0 0
        %809 = vmatpush1.bf16.xpose.msra.mxu0 %v806
        %810 = vmatprep.subr.bf16.mxu0 0
        %811 = vmatpush1.bf16.xpose.msra.mxu0 0
        %812 = vmatprep.subr.bf16.mxu0 0
        %813 = vmatpush1.bf16.xpose.msra.mxu0 0
        %814 = vmatprep.subr.bf16.mxu0 0
        %815 = vmatpush1.bf16.xpose.msra.mxu0 0
        %816 = vmatprep.subr.bf16.mxu0 0
        %817 = vmatpush1.bf16.xpose.msra.mxu0 0
        %818 = vmatprep.subr.bf16.mxu0 0
        %819 = vmatpush1.bf16.xpose.msra.mxu0 0
        %820 = vmatprep.subr.bf16.mxu0 0
        %821 = vmatpush1.bf16.xpose.msra.mxu0 0
        %822 = vmatprep.subr.bf16.mxu0 0
        %823 = vmatpush1.bf16.xpose.msra.mxu0 0
        %824 = vmatprep.subr.bf16.mxu0 0
        %825 = vmatpush1.bf16.xpose.msra.mxu0 0
        %826 = vmatprep.subr.bf16.mxu0 0
        %827 = vmatpush1.bf16.xpose.msra.mxu0 0
        %828 = vmatprep.subr.bf16.mxu0 0
        %829 = vmatpush1.bf16.xpose.msra.mxu0 0
        %830 = vmatprep.subr.bf16.mxu0 0
        %831 = vmatpush1.bf16.xpose.msra.mxu0 0
        %832 = vmatprep.subr.bf16.mxu0 0
        %833 = vmatpush1.bf16.xpose.msra.mxu0 0
        %834 = vmatprep.subr.bf16.mxu0 0
        %835 = vmatpush1.bf16.xpose.msra.mxu0 0
        %836 = vmatprep.subr.bf16.mxu0 0
        %837 = vmatpush1.bf16.xpose.msra.mxu0 0
        %838 = vmatprep.subr.bf16.mxu0 0
        %839 = vmatpush1.bf16.xpose.msra.mxu0 0
        %840 = vmatprep.mubr.bf16.mxu0 0
        %841 = vmatmul.mubr.bf16.gmra.mrb[0].mxu0 %v803
        %v842 = vpop.f32.mrb[0].mxu0
        %v843 = vadd.f32 0.0, %v842
        %v844 = vpop.f32.mrb[0].mxu0
        %v845 = vpop.f32.mrb[0].mxu0
        %v846 = vpop.f32.mrb[0].mxu0
        %847 = vdwg.mxu0
        %v848 = vmul.f32 %v843, 0.35355338
        %v849 = vsel %vm579, %v848, -inf
        %850 = vmax.xlane.f32.xlu0 %v849
        %v851 = vpop.xlane.xlu0 %850
        %v852 = vsub.f32 %v848, %v851
        %v853 = vmul.f32 %v852, 1.442695
        %v854 = vpow.pop %v853
        %v855 = vsel %vm579, %v854, 0.0
        %856 = vadd.xlane.f32.xlu0 %v855
        %v857 = vpop.xlane.xlu0 %856
        %v858 = vrcp.pop %v857
        %v859 = vmul.f32 %v854, %v858
        %v860 = vpack.c.bf16 %v859, %v859
        %861 = vrot.lane.b32.xlu0 %v575, 112
        %v862 = vpop.permute.xlu0 %861
        %v864 = vsel %vm579, %v860, 0
        %v867 = vsel %vm642, %v862, 0
        %869 = vmatprep.subr.bf16.mxu0 0
        %870 = vmatpush1.bf16.msra.mxu0 %v867
        %871 = vmatprep.subr.bf16.mxu0 0
        %872 = vmatpush1.bf16.msra.mxu0 0
        %873 = vmatprep.subr.bf16.mxu0 0
        %874 = vmatpush1.bf16.msra.mxu0 0
        %875 = vmatprep.subr.bf16.mxu0 0
        %876 = vmatpush1.bf16.msra.mxu0 0
        %877 = vmatprep.subr.bf16.mxu0 0
        %878 = vmatpush1.bf16.msra.mxu0 0
        %879 = vmatprep.subr.bf16.mxu0 0
        %880 = vmatpush1.bf16.msra.mxu0 0
        %881 = vmatprep.subr.bf16.mxu0 0
        %882 = vmatpush1.bf16.msra.mxu0 0
        %883 = vmatprep.subr.bf16.mxu0 0
        %884 = vmatpush1.bf16.msra.mxu0 0
        %885 = vmatprep.subr.bf16.mxu0 0
        %886 = vmatpush1.bf16.msra.mxu0 0
        %887 = vmatprep.subr.bf16.mxu0 0
        %888 = vmatpush1.bf16.msra.mxu0 0
        %889 = vmatprep.subr.bf16.mxu0 0
        %890 = vmatpush1.bf16.msra.mxu0 0
        %891 = vmatprep.subr.bf16.mxu0 0
        %892 = vmatpush1.bf16.msra.mxu0 0
        %893 = vmatprep.subr.bf16.mxu0 0
        %894 = vmatpush1.bf16.msra.mxu0 0
        %895 = vmatprep.subr.bf16.mxu0 0
        %896 = vmatpush1.bf16.msra.mxu0 0
        %897 = vmatprep.subr.bf16.mxu0 0
        %898 = vmatpush1.bf16.msra.mxu0 0
        %899 = vmatprep.subr.bf16.mxu0 0
        %900 = vmatpush1.bf16.msra.mxu0 0
        %901 = vmatprep.mubr.bf16.mxu0 0
        %902 = vmatmul.mubr.bf16.gmra.mrb[0].mxu0 %v864
        %v903 = vpop.f32.mrb[0].mxu0
        %v904 = vadd.f32 0.0, %v903
        %v905 = vpop.f32.mrb[0].mxu0
        %v906 = vpop.f32.mrb[0].mxu0
        %v907 = vpop.f32.mrb[0].mxu0
        %908 = vdwg.mxu0
        %909 = vrot.lane.b32.xlu0 %v574, 104
        %v910 = vpop.permute.xlu0 %909
        %911 = vrot.lane.b32.xlu0 %v574, 72
        %v912 = vpop.permute.xlu0 %911
        %v914 = vsel %vm579, %v910, 0
        %v917 = vsel %vm579, %v912, 0
        %919 = vmatprep.subr.bf16.mxu0 0
        %920 = vmatpush1.bf16.xpose.msra.mxu0 %v917
        %921 = vmatprep.subr.bf16.mxu0 0
        %922 = vmatpush1.bf16.xpose.msra.mxu0 0
        %923 = vmatprep.subr.bf16.mxu0 0
        %924 = vmatpush1.bf16.xpose.msra.mxu0 0
        %925 = vmatprep.subr.bf16.mxu0 0
        %926 = vmatpush1.bf16.xpose.msra.mxu0 0
        %927 = vmatprep.subr.bf16.mxu0 0
        %928 = vmatpush1.bf16.xpose.msra.mxu0 0
        %929 = vmatprep.subr.bf16.mxu0 0
        %930 = vmatpush1.bf16.xpose.msra.mxu0 0
        %931 = vmatprep.subr.bf16.mxu0 0
        %932 = vmatpush1.bf16.xpose.msra.mxu0 0
        %933 = vmatprep.subr.bf16.mxu0 0
        %934 = vmatpush1.bf16.xpose.msra.mxu0 0
        %935 = vmatprep.subr.bf16.mxu0 0
        %936 = vmatpush1.bf16.xpose.msra.mxu0 0
        %937 = vmatprep.subr.bf16.mxu0 0
        %938 = vmatpush1.bf16.xpose.msra.mxu0 0
        %939 = vmatprep.subr.bf16.mxu0 0
        %940 = vmatpush1.bf16.xpose.msra.mxu0 0
        %941 = vmatprep.subr.bf16.mxu0 0
        %942 = vmatpush1.bf16.xpose.msra.mxu0 0
        %943 = vmatprep.subr.bf16.mxu0 0
        %944 = vmatpush1.bf16.xpose.msra.mxu0 0
        %945 = vmatprep.subr.bf16.mxu0 0
        %946 = vmatpush1.bf16.xpose.msra.mxu0 0
        %947 = vmatprep.subr.bf16.mxu0 0
        %948 = vmatpush1.bf16.xpose.msra.mxu0 0
        %949 = vmatprep.subr.bf16.mxu0 0
        %950 = vmatpush1.bf16.xpose.msra.mxu0 0
        %951 = vmatprep.mubr.bf16.mxu0 0
        %952 = vmatmul.mubr.bf16.gmra.mrb[0].mxu0 %v914
        %v953 = vpop.f32.mrb[0].mxu0
        %v954 = vadd.f32 0.0, %v953
        %v955 = vpop.f32.mrb[0].mxu0
        %v956 = vpop.f32.mrb[0].mxu0
        %v957 = vpop.f32.mrb[0].mxu0
        %958 = vdwg.mxu0
        %v959 = vmul.f32 %v954, 0.35355338
        %v960 = vsel %vm579, %v959, -inf
        %961 = vmax.xlane.f32.xlu0 %v960
        %v962 = vpop.xlane.xlu0 %961
        %v963 = vsub.f32 %v959, %v962
        %v964 = vmul.f32 %v963, 1.442695
        %v965 = vpow.pop %v964
        %v966 = vsel %vm579, %v965, 0.0
        %967 = vadd.xlane.f32.xlu0 %v966
        %v968 = vpop.xlane.xlu0 %967
        %v969 = vrcp.pop %v968
        %v970 = vmul.f32 %v965, %v969
        %v971 = vpack.c.bf16 %v970, %v970
        %972 = vrot.lane.b32.xlu0 %v575, 104
        %v973 = vpop.permute.xlu0 %972
        %v975 = vsel %vm579, %v971, 0
        %v978 = vsel %vm642, %v973, 0
        %980 = vmatprep.subr.bf16.mxu0 0
        %981 = vmatpush1.bf16.msra.mxu0 %v978
        %982 = vmatprep.subr.bf16.mxu0 0
        %983 = vmatpush1.bf16.msra.mxu0 0
        %984 = vmatprep.subr.bf16.mxu0 0
        %985 = vmatpush1.bf16.msra.mxu0 0
        %986 = vmatprep.subr.bf16.mxu0 0
        %987 = vmatpush1.bf16.msra.mxu0 0
        %988 = vmatprep.subr.bf16.mxu0 0
        %989 = vmatpush1.bf16.msra.mxu0 0
        %990 = vmatprep.subr.bf16.mxu0 0
        %991 = vmatpush1.bf16.msra.mxu0 0
        %992 = vmatprep.subr.bf16.mxu0 0
        %993 = vmatpush1.bf16.msra.mxu0 0
        %994 = vmatprep.subr.bf16.mxu0 0
        %995 = vmatpush1.bf16.msra.mxu0 0
        %996 = vmatprep.subr.bf16.mxu0 0
        %997 = vmatpush1.bf16.msra.mxu0 0
        %998 = vmatprep.subr.bf16.mxu0 0
        %999 = vmatpush1.bf16.msra.mxu0 0
        %1000 = vmatprep.subr.bf16.mxu0 0
        %1001 = vmatpush1.bf16.msra.mxu0 0
        %1002 = vmatprep.subr.bf16.mxu0 0
        %1003 = vmatpush1.bf16.msra.mxu0 0
        %1004 = vmatprep.subr.bf16.mxu0 0
        %1005 = vmatpush1.bf16.msra.mxu0 0
        %1006 = vmatprep.subr.bf16.mxu0 0
        %1007 = vmatpush1.bf16.msra.mxu0 0
        %1008 = vmatprep.subr.bf16.mxu0 0
        %1009 = vmatpush1.bf16.msra.mxu0 0
        %1010 = vmatprep.subr.bf16.mxu0 0
        %1011 = vmatpush1.bf16.msra.mxu0 0
        %1012 = vmatprep.mubr.bf16.mxu0 0
        %1013 = vmatmul.mubr.bf16.gmra.mrb[0].mxu0 %v975
        %v1014 = vpop.f32.mrb[0].mxu0
        %v1015 = vadd.f32 0.0, %v1014
        %v1016 = vpop.f32.mrb[0].mxu0
        %v1017 = vpop.f32.mrb[0].mxu0
        %v1018 = vpop.f32.mrb[0].mxu0
        %1019 = vdwg.mxu0
        %1021 = vrot.lane.b32.xlu0 %v793, 8
        %v1022 = vpop.permute.xlu0 %1021
        %1025 = vrot.lane.b32.xlu0 %v904, 16
        %v1026 = vpop.permute.xlu0 %1025
        %1029 = vrot.lane.b32.xlu0 %v1015, 24
        %v1030 = vpop.permute.xlu0 %1029
        %v1032 = vsel %vm579, %v681, %v1022
        %vm1033 = vcmask 130048
        %v1034 = vsel %vm1033, %v1032, %v1026
        %vm1035 = vcmask 195584
        %v1036 = vsel %vm1035, %v1034, %v1030
        %v1037 = vpack.c.bf16 %v1036, %v1036
        %v1038 = vld [vmem:[#allocation10] sm:$0xff]
        %v1039 = vld [vmem:[#allocation10 + $0x8] sm:$0xff]
        %v1040 = vld [vmem:[#allocation10 + $0x10] sm:$0xff]
        %v1041 = vld [vmem:[#allocation10 + $0x18] sm:$0xff]
        %v1042 = vpack.c.bf16 %v1039, %v1038
        %v1043 = vpack.c.bf16 %v1041, %v1040
        %v1044 = vld [vmem:[%s7] sm:$0x1]
        %v1046 = vlaneseq
        %v1047 = vshrl.u32 %v1046, 7
        %v1048 = vsub.s32 0, %v1047
        %v1049 = vrot.slane %v1044, %v1048
        %v1052 = vsel %vm473, %v1037, 0
        %1054 = vmatprep.subr.bf16.mxu0 0
        %1055 = vmatpush1.bf16.msra.mxu0 %v1042
        %1056 = vmatprep.subr.bf16.mxu0 0
        %1057 = vmatpush1.bf16.msra.mxu0 %v1043
        %1058 = vmatprep.subr.bf16.mxu0 0
        %1059 = vmatpush1.bf16.msra.mxu0 0
        %1060 = vmatprep.subr.bf16.mxu0 0
        %1061 = vmatpush1.bf16.msra.mxu0 0
        %1062 = vmatprep.subr.bf16.mxu0 0
        %1063 = vmatpush1.bf16.msra.mxu0 0
        %1064 = vmatprep.subr.bf16.mxu0 0
        %1065 = vmatpush1.bf16.msra.mxu0 0
        %1066 = vmatprep.subr.bf16.mxu0 0
        %1067 = vmatpush1.bf16.msra.mxu0 0
        %1068 = vmatprep.subr.bf16.mxu0 0
        %1069 = vmatpush1.bf16.msra.mxu0 0
        %1070 = vmatprep.subr.bf16.mxu0 0
        %1071 = vmatpush1.bf16.msra.mxu0 0
        %1072 = vmatprep.subr.bf16.mxu0 0
        %1073 = vmatpush1.bf16.msra.mxu0 0
        %1074 = vmatprep.subr.bf16.mxu0 0
        %1075 = vmatpush1.bf16.msra.mxu0 0
        %1076 = vmatprep.subr.bf16.mxu0 0
        %1077 = vmatpush1.bf16.msra.mxu0 0
        %1078 = vmatprep.subr.bf16.mxu0 0
        %1079 = vmatpush1.bf16.msra.mxu0 0
        %1080 = vmatprep.subr.bf16.mxu0 0
        %1081 = vmatpush1.bf16.msra.mxu0 0
        %1082 = vmatprep.subr.bf16.mxu0 0
        %1083 = vmatpush1.bf16.msra.mxu0 0
        %1084 = vmatprep.subr.bf16.mxu0 0
        %1085 = vmatpush1.bf16.msra.mxu0 0
        %1086 = vmatprep.mubr.bf16.mxu0 0
        %1087 = vmatmul.mubr.bf16.gmra.mrb[0].mxu0 %v1052
        %v1088 = vpop.f32.mrb[0].mxu0
        %v1089 = vadd.f32 %v1049, %v1088
        %v1090 = vpop.f32.mrb[0].mxu0
        %v1091 = vpop.f32.mrb[0].mxu0
        %v1092 = vpop.f32.mrb[0].mxu0
        %1093 = vdwg.mxu0
        %v1094 = vadd.f32 %v1089, %v456
        %v1095 = vld [vmem:[%s8] sm:$0x1]
        %v1096 = vld [vmem:[%s9] sm:$0x1]
        %v1097 = vsel %vm473, %v1094, 0.0
        %1098 = vadd.xlane.f32.xlu0 %v1097
        %v1099 = vpop.xlane.xlu0 %1098
        %v1100 = vrcp.pop 32.0
        %v1101 = vmul.f32 %v1099, %v1100
        %v1102 = vsub.f32 %v1094, %v1101
        %v1103 = vmul.f32 %v1102, %v1102
        %v1104 = vsel %vm473, %v1103, 0.0
        %1105 = vadd.xlane.f32.xlu0 %v1104
        %v1106 = vpop.xlane.xlu0 %1105
        %v1107 = vmul.f32 %v1106, %v1100
        %v1108 = vadd.f32 %v1107, 1e-05
        %v1109 = vrsqrt.pop %v1108
        %v1110 = vmul.f32 %v1102, %v1109
        %v1112 = vlaneseq
        %v1113 = vshrl.u32 %v1112, 7
        %v1114 = vsub.s32 0, %v1113
        %v1115 = vrot.slane %v1095, %v1114
        %v1117 = vmul.f32 %v1110, %v1115
        %v1119 = vlaneseq
        %v1120 = vshrl.u32 %v1119, 7
        %v1121 = vsub.s32 0, %v1120
        %v1122 = vrot.slane %v1096, %v1121
        %v1124 = vadd.f32 %v1117, %v1122
        %1125 = vst.msk [vmem:[%s454] sm:$0xff] %vm473, %v1124
        %s1126 = sand.u32 %s259, 1
        %s1127 = scalar_lea.sflag [#allocation4], %s1126
        %s1128 = sand.u32 %s259, 1
        %s1129 = smul.addr %s1128, 8
        %s1130 = scalar_lea.vmem [#allocation11], %s1129
        // Predicated region
        $region81: #{tpu_custom_call.1} parent=59 // pred_check
          %p1131 = pneg %p269
        $region82: #{tpu_custom_call.1} parent=59 // pred_check_branch
          %1133 = sbr.rel (%p1131) target = $region84
        $region83: #{tpu_custom_call.1} parent=59 // pred_region
          %s1135 = ssub.s32 128, 128
          %1136 = vsyncadd %s1127, %s1135
          %s1137 = smul.addr %s31, 128
          %s1138 = scalar_lea.hbm %s10, %s1137
          %s1140 = sshll.u32 %s1130, 4
          %s1141 = int_to_ptr.vmem [resolvable:$true] %s1140
          %1143 = dma.vmem_to_hbm [thread:$0]  %s1141, 128, %s1138, %s1127
        $region84: #{tpu_custom_call.1} parent=59 // pred_fallthru
          _
      $region60: #{tpu_custom_call.1} parent=5 // pred_fallthru
        _
      %p1144 = scmp.le.s32.totalorder 2, %s26
      // Predicated region
      $region85: #{tpu_custom_call.1} parent=5 // pred_check
        %p1145 = pneg %p1144
      $region86: #{tpu_custom_call.1} parent=5 // pred_check_branch
        %1147 = sbr.rel (%p1145) target = $region88
      $region87: #{tpu_custom_call.1} parent=5 // pred_region
        %s1148 = ssub.s32 %s26, 2
        // Predicated region
        $region89: #{tpu_custom_call.1} parent=87 // pred_check
          %p1149 = pneg %p275
        $region90: #{tpu_custom_call.1} parent=87 // pred_check_branch
          %1151 = sbr.rel (%p1149) target = $region92
        $region91: #{tpu_custom_call.1} parent=87 // pred_region
          %s1152 = sand.u32 %s260, 1
          %s1153 = scalar_lea.sflag [#allocation4], %s1152
          %s1154 = sand.u32 %s260, 1
          %s1155 = smul.addr %s1154, 8
          %s1156 = scalar_lea.vmem [#allocation11], %s1155
          %1157 = dma.done %s1153, 128
        $region92: #{tpu_custom_call.1} parent=87 // pred_fallthru
          _
      $region88: #{tpu_custom_call.1} parent=5 // pred_fallthru
        _
    $region6: #{tpu_custom_call.1} parent=1 // loop_footer
      %s30 = sadd.s32 1, %s26
    $region7: #{tpu_custom_call.1} parent=1 // loop_footer_branch
      %25 = sbr.rel target = $region3
    $region8: #{tpu_custom_call.1} parent=1 // loop_exit
      _
    %1158 = vsyncpa [#allocation3], 1
    %s1159 = scalar_lea.sflag [#allocation3], 1
    %1160 = vsyncpa %s1159, 1
    %1161 = vsyncpa [#allocation6], 1
    %s1162 = scalar_lea.sflag [#allocation6], 1
    %1163 = vsyncpa %s1162, 1
    %1164 = vsyncpa [#allocation9], 1
    %1165 = vsyncpa [#allocation4], 1
    %s1166 = scalar_lea.sflag [#allocation4], 1
    %1167 = vsyncpa %s1166, 1

</llo_original>
